<compile_context>
chip_gen: v7x
topology: tpu7x:2x2x1
jax: 0.10.0
libtpu: 0.0.40
codegen_flags: <defaults>
</compile_context>

<pallas_src>
import jax
import jax.numpy as jnp
from jax import lax
from jax.experimental import pallas as pl
from jax.experimental.pallas import tpu as pltpu

EPS = 1e-5          # torch.nn.InstanceNorm1d default eps
LRELU_SLOPE = 0.2   # nn.LeakyReLU(0.2)
LANE = 128

_SINGLE_BUFFER_OK = None   # resolved on first pallas_call (pl.Buffered(1) support)


def _round_up(n, m):
    return ((n + m - 1) // m) * m


def _pad2d(a, rows, cols):
    return jnp.pad(a, ((0, rows - a.shape[0]), (0, cols - a.shape[1])))


def _default_tile_b(batch):
    """Batch tile: 128 on v5e (4x128^2 MXU), 256 on v6e/v7x (2x256^2 MXU);
    on v7x keep >= 2 grid steps so both TensorCores get work."""
    try:
        kind = jax.devices()[0].device_kind.lower()
    except Exception:
        kind = ""
    cap = 128 if ("v5 lite" in kind or "v5e" in kind) else 256
    tb = min(cap, _round_up(batch, 16))
    if "v7" in kind and batch > 16:
        tb = min(tb, max(16, _round_up(pl.cdiv(batch, 2), 16)))
    return tb


def _vmem_limit_bytes(weight_bytes, act_bytes_per_step):
    """Size the scoped-VMEM limit from the real footprint, leaving headroom
    under physical VMEM (96 MiB cap on v5e/v6e, ~48 MiB on v7x)."""
    try:
        phys = pltpu.get_tpu_info().vmem_capacity_bytes
    except Exception:
        phys = 64 << 20                      # conservative (v7x-sized) default
    cap = (phys * 3) // 4
    want = 2 * weight_bytes + 6 * act_bytes_per_step + (4 << 20)
    return int(min(max(want, 32 << 20), cap))


def _make_kernel(ngh_real, ngh_pad):
    inv_n = 1.0 / float(ngh_real)
    two_n = 2 * ngh_pad

    def _lrelu(v):
        # one VPU max instead of compare + select
        return jnp.maximum(v, LRELU_SLOPE * v)

    def _inorm(v, fmask):
        # InstanceNorm1d(affine=False) over the real feature lanes only.
        # Both mean and variance are masked so lane padding can never corrupt
        # the statistics, and the returned pad lanes are exactly zero.
        vm = v * fmask
        mu = jnp.sum(vm, axis=1, keepdims=True) * inv_n
        vc = (v - mu) * fmask
        var = jnp.sum(vc * vc, axis=1, keepdims=True) * inv_n
        return vc * lax.rsqrt(var + EPS)

    def kernel(x_ref, s_ref, style_w_ref, style_b_ref,
               fc1w_ref, fc1b_ref, fc2w_ref, fc2b_ref, o_ref):
        x = x_ref[...]                                   # (TB, ngh_p) f32
        s = s_ref[...]                                   # (TB, att_p) bf16

        # 1.0 on real feature lanes, 0.0 on pad lanes (hoisted, built once).
        fmask = (lax.broadcasted_iota(jnp.int32, (1, ngh_pad), 1)
                 < ngh_real).astype(jnp.float32)

        # --- AdaIN 1: gamma1/beta1 from the first half of the fused style W.
        gb1 = jnp.dot(s, style_w_ref[:, pl.ds(0, two_n)],
                      preferred_element_type=jnp.float32)
        gb1 = gb1 + style_b_ref[:, pl.ds(0, two_n)]
        gamma1 = gb1[:, :ngh_pad]
        beta1 = gb1[:, ngh_pad:]

        h = (1.0 + gamma1) * _inorm(x, fmask) + beta1
        h = _lrelu(h)

        # --- fc1 -> lrelu (bf16 operands, f32 accumulation).
        h = jnp.dot(h.astype(jnp.bfloat16), fc1w_ref[...],
                    preferred_element_type=jnp.float32) + fc1b_ref[...]
        h = _lrelu(h)

        # --- AdaIN 2 (gamma2/beta2 computed late: only 2*ngh_p style columns
        # of f32 intermediate are ever live at once).
        gb2 = jnp.dot(s, style_w_ref[:, pl.ds(two_n, two_n)],
                      preferred_element_type=jnp.float32)
        gb2 = gb2 + style_b_ref[:, pl.ds(two_n, two_n)]
        gamma2 = gb2[:, :ngh_pad]
        beta2 = gb2[:, ngh_pad:]

        h = (1.0 + gamma2) * _inorm(h, fmask) + beta2
        h = _lrelu(h)

        # --- fc2 -> relu.
        h = jnp.dot(h.astype(jnp.bfloat16), fc2w_ref[...],
                    preferred_element_type=jnp.float32) + fc2b_ref[...]
        o_ref[...] = jnp.maximum(h, 0.0)

    return kernel


def prepare_params(params):
    """One-time packing of the Linear weights into lane-dense, kernel-ready
    slabs (pre-split gamma/beta, fused style weight, bf16 MXU operands).
    Build once, reuse across forward calls."""
    ngh = params["fc1_w"].shape[0]
    att = params["n1_w"].shape[0]
    res = params["fc2_w"].shape[1]
    ngh_p, att_p, res_p = (_round_up(d, LANE) for d in (ngh, att, res))

    def split_style(w, b):
        wg, wb = w[:, :ngh], w[:, ngh:]
        bg, bb = b[:ngh], b[ngh:]
        return ((_pad2d(wg, att_p, ngh_p), _pad2d(wb, att_p, ngh_p)),
                (_pad2d(bg[None, :], 1, ngh_p), _pad2d(bb[None, :], 1, ngh_p)))

    (wg1, wb1), (bg1, bb1) = split_style(params["n1_w"], params["n1_b"])
    (wg2, wb2), (bg2, bb2) = split_style(params["n2_w"], params["n2_b"])

    style_w = jnp.concatenate([wg1, wb1, wg2, wb2],
                              axis=1).astype(jnp.bfloat16)   # (att_p, 4*ngh_p)
    style_b = jnp.concatenate([bg1, bb1, bg2, bb2], axis=1)   # (1, 4*ngh_p) f32

    fc1_w = _pad2d(params["fc1_w"], ngh_p, ngh_p).astype(jnp.bfloat16)
    fc1_b = _pad2d(params["fc1_b"][None, :], 1, ngh_p)
    fc2_w = _pad2d(params["fc2_w"], ngh_p, res_p).astype(jnp.bfloat16)
    fc2_b = _pad2d(params["fc2_b"][None, :], 1, res_p)

    return dict(style_w=style_w, style_b=style_b,
                fc1_w=fc1_w, fc1_b=fc1_b, fc2_w=fc2_w, fc2_b=fc2_b,
                ngh=ngh, ngh_p=ngh_p, att=att, att_p=att_p,
                res=res, res_p=res_p)


def adain_resblk(x, s, packed, *, tile_b=None):
    """x: (B, ngh), s: (B, attSize), packed = prepare_params(...) -> (B, resSize)."""
    global _SINGLE_BUFFER_OK
    B = x.shape[0]
    ngh, ngh_p = packed["ngh"], packed["ngh_p"]
    att_p = packed["att_p"]
    res, res_p = packed["res"], packed["res_p"]

    if tile_b is None:
        tile_b = _default_tile_b(B)
    b_p = _round_up(B, tile_b)

    # Only per-call packing: lane/sublane zero-pad the activations.  s goes in
    # bf16 (it is only an MXU operand) -> half its DMA bytes.
    # TODO(synk): x / the output could also stream as bf16 if the consumer
    # accepts it; kept f32 so InstanceNorm statistics match the f32 reference.
    x_p = _pad2d(x, b_p, ngh_p)
    s_p = _pad2d(s.astype(jnp.bfloat16), b_p, att_p)

    weights = (packed["style_w"], packed["style_b"],
               packed["fc1_w"], packed["fc1_b"],
               packed["fc2_w"], packed["fc2_b"])
    weight_bytes = sum(int(w.size) * w.dtype.itemsize for w in weights)
    act_bytes = tile_b * (ngh_p * 4 + att_p * 2 + res_p * 4)
    vmem_limit = _vmem_limit_bytes(weight_bytes, act_bytes)

    kernel = _make_kernel(ngh, ngh_p)

    def bmap(i):
        return (i, 0)

    def cmap(i):
        return (0, 0)

    def run(single_buffer_weights):
        # Grid-invariant weights do not need double-buffering; Buffered(1)
        # halves their VMEM footprint.
        wkw = ({"pipeline_mode": pl.Buffered(1)}
               if single_buffer_weights else {})
        in_specs = [
            pl.BlockSpec((tile_b, ngh_p), bmap),              # x (f32)
            pl.BlockSpec((tile_b, att_p), bmap),              # s (bf16)
            pl.BlockSpec((att_p, 4 * ngh_p), cmap, **wkw),    # fused style W
            pl.BlockSpec((1, 4 * ngh_p), cmap, **wkw),        # fused style b
            pl.BlockSpec((ngh_p, ngh_p), cmap, **wkw),        # fc1 W
            pl.BlockSpec((1, ngh_p), cmap, **wkw),            # fc1 b
            pl.BlockSpec((ngh_p, res_p), cmap, **wkw),        # fc2 W
            pl.BlockSpec((1, res_p), cmap, **wkw),            # fc2 b
        ]
        return pl.pallas_call(
            kernel,
            out_shape=jax.ShapeDtypeStruct((b_p, res_p), jnp.float32),
            grid=(b_p // tile_b,),
            in_specs=in_specs,
            out_specs=pl.BlockSpec((tile_b, res_p), bmap),
            compiler_params=pltpu.CompilerParams(
                dimension_semantics=("parallel",),
                vmem_limit_bytes=vmem_limit),
        )(x_p, s_p, *weights)

    if _SINGLE_BUFFER_OK is None:
        try:
            out = jax.block_until_ready(run(True))
            _SINGLE_BUFFER_OK = True
        except Exception:
            # pl.Buffered(1) / pipeline_mode unsupported on this jax build.
            _SINGLE_BUFFER_OK = False
            out = run(False)
    else:
        out = run(_SINGLE_BUFFER_OK)

    return out[:B, :res]


def init_params(key, ngh, att_size, res_size):
    # weights_init: Linear weight ~ N(0, 0.02), bias = 0.  Weights stored
    # pre-transposed as (in, out); biases as (out,).
    k1, k2, k3, k4 = jax.random.split(key, 4)

    def lin(k, fan_in, fan_out):
        w = 0.02 * jax.random.normal(k, (fan_out, fan_in), dtype=jnp.float32)
        b = jnp.zeros((fan_out,), dtype=jnp.float32)
        return w.T, b

    fc1_w, fc1_b = lin(k1, ngh, ngh)
    fc2_w, fc2_b = lin(k2, ngh, res_size)
    n1_w, n1_b = lin(k3, att_size, 2 * ngh)
    n2_w, n2_b = lin(k4, att_size, 2 * ngh)
    return dict(fc1_w=fc1_w, fc1_b=fc1_b, fc2_w=fc2_w, fc2_b=fc2_b,
                n1_w=n1_w, n1_b=n1_b, n2_w=n2_w, n2_b=n2_b)


def reference_forward(x, s, params):
    """Pure-JAX replica of the PyTorch forward (same bf16-operand matmul
    numerics as the kernel) for verification."""
    ngh = x.shape[1]

    def mm(a, w):
        return jnp.dot(a.astype(jnp.bfloat16), w.astype(jnp.bfloat16),
                       preferred_element_type=jnp.float32)

    def lrelu(v):
        return jnp.maximum(v, LRELU_SLOPE * v)

    def adain(v, s, w, b):
        h = mm(s, w) + b
        gamma, beta = h[:, :ngh], h[:, ngh:]
        mu = jnp.mean(v, axis=1, keepdims=True)
        var = jnp.mean((v - mu) ** 2, axis=1, keepdims=True)
        vn = (v - mu) * lax.rsqrt(var + EPS)
        return (1.0 + gamma) * vn + beta

    h = lrelu(adain(x, s, params["n1_w"], params["n1_b"]))
    h = lrelu(mm(h, params["fc1_w"]) + params["fc1_b"])
    h = lrelu(adain(h, s, params["n2_w"], params["n2_b"]))
    h = mm(h, params["fc2_w"]) + params["fc2_b"]
    return jnp.maximum(h, 0.0)


if __name__ == "__main__":
    # opt.ngh, opt.attSize, opt.resSize (small synthetic config)
    B, NGH, ATT, RES = 8, 32, 16, 64

    key = jax.random.PRNGKey(0)
    kx, ks, kp = jax.random.split(key, 3)
    x = jax.random.normal(kx, (B, NGH), dtype=jnp.float32)
    s = jax.random.normal(ks, (B, ATT), dtype=jnp.float32)
    params = init_params(kp, NGH, ATT, RES)

    packed = prepare_params(params)           # one-time packing, off hot path
    out = jax.block_until_ready(adain_resblk(x, s, packed))
    ref = reference_forward(x, s, params)

    assert out.shape == (B, RES)
    err = float(jnp.max(jnp.abs(out - ref)))
    assert jnp.allclose(out, ref, rtol=1e-2, atol=1e-3), f"max abs err {err}"

    print("KERNEL_OK")
</pallas_src>

<mosaic_0001>
module attributes {stable_mosaic.version = 11 : i64} {
  func.func @kernel(%arg0: i32, %arg1: memref<16x128xf32, #tpu.memory_space<vmem>>, %arg2: memref<16x128xbf16, #tpu.memory_space<vmem>>, %arg3: memref<128x512xbf16, #tpu.memory_space<vmem>>, %arg4: memref<1x512xf32, #tpu.memory_space<vmem>>, %arg5: memref<128x128xbf16, #tpu.memory_space<vmem>>, %arg6: memref<1x128xf32, #tpu.memory_space<vmem>>, %arg7: memref<128x128xbf16, #tpu.memory_space<vmem>>, %arg8: memref<1x128xf32, #tpu.memory_space<vmem>>, %arg9: memref<16x128xf32, #tpu.memory_space<vmem>>) attributes {dimension_semantics = [#tpu.dimension_semantics<parallel>], iteration_bounds = array<i64: 1>, scalar_prefetch = 0 : i64, scratch_operands = 0 : i64, tpu.core_type = #tpu.core_type<tc>, window_params = [{transform_indices = @transform_0, window_bounds = array<i64: 16, 128>}, {transform_indices = @transform_1, window_bounds = array<i64: 16, 128>}, {pipeline_mode = #tpu.pipeline_mode<synchronous>, transform_indices = @transform_2, window_bounds = array<i64: 128, 512>}, {pipeline_mode = #tpu.pipeline_mode<synchronous>, transform_indices = @transform_3, window_bounds = array<i64: 1, 512>}, {pipeline_mode = #tpu.pipeline_mode<synchronous>, transform_indices = @transform_4, window_bounds = array<i64: 128, 128>}, {pipeline_mode = #tpu.pipeline_mode<synchronous>, transform_indices = @transform_5, window_bounds = array<i64: 1, 128>}, {pipeline_mode = #tpu.pipeline_mode<synchronous>, transform_indices = @transform_6, window_bounds = array<i64: 128, 128>}, {pipeline_mode = #tpu.pipeline_mode<synchronous>, transform_indices = @transform_7, window_bounds = array<i64: 1, 128>}, {transform_indices = @transform_8, window_bounds = array<i64: 16, 128>}]} {
    %c0 = arith.constant 0 : index
    %c0_0 = arith.constant 0 : index
    %0 = vector.load %arg1[%c0, %c0_0] : memref<16x128xf32, #tpu.memory_space<vmem>>, vector<16x128xf32>
    %c0_1 = arith.constant 0 : index
    %c0_2 = arith.constant 0 : index
    %1 = vector.load %arg2[%c0_1, %c0_2] : memref<16x128xbf16, #tpu.memory_space<vmem>>, vector<16x128xbf16>
    %2 = tpu.iota {dimensions = array<i32: 1>} : vector<1x128xi32>
    %c32_i32 = arith.constant 32 : i32
    %3 = vector.broadcast %c32_i32 : i32 to vector<1x128xi32>
    %4 = arith.cmpi slt, %2, %3 : vector<1x128xi32>
    %5 = arith.extui %4 : vector<1x128xi1> to vector<1x128xi32>
    %6 = arith.sitofp %5 : vector<1x128xi32> to vector<1x128xf32>
    %c0_3 = arith.constant 0 : index
    %c0_4 = arith.constant 0 : index
    %7 = vector.load %arg3[%c0_3, %c0_4] : memref<128x512xbf16, #tpu.memory_space<vmem>>, vector<128x256xbf16>
    %cst = arith.constant dense<0.000000e+00> : vector<16x256xf32>
    %8 = tpu.matmul %1, %7, %cst {dimension_numbers = #tpu.dot_dimension_numbers<[1], [0], [0], [1], [0, 0, 1, 1], [], []>} : vector<16x128xbf16>, vector<128x256xbf16>, vector<16x256xf32> -> vector<16x256xf32>
    %c0_5 = arith.constant 0 : index
    %c0_6 = arith.constant 0 : index
    %9 = vector.load %arg4[%c0_5, %c0_6] : memref<1x512xf32, #tpu.memory_space<vmem>>, vector<1x256xf32>
    %10 = vector.broadcast %9 : vector<1x256xf32> to vector<16x256xf32>
    %11 = arith.addf %8, %10 : vector<16x256xf32>
    %12 = vector.extract_strided_slice %11 {offsets = [0, 0], sizes = [16, 128], strides = [1, 1]} : vector<16x256xf32> to vector<16x128xf32>
    %13 = vector.extract_strided_slice %11 {offsets = [0, 128], sizes = [16, 128], strides = [1, 1]} : vector<16x256xf32> to vector<16x128xf32>
    %cst_7 = arith.constant 1.000000e+00 : f32
    %14 = vector.broadcast %cst_7 : f32 to vector<16x128xf32>
    %15 = arith.addf %14, %12 : vector<16x128xf32>
    %16 = vector.broadcast %6 : vector<1x128xf32> to vector<16x128xf32>
    %17 = arith.mulf %0, %16 : vector<16x128xf32>
    %cst_8 = arith.constant dense<0.000000e+00> : vector<16xf32>
    %18 = vector.multi_reduction <add>, %17, %cst_8 [1] : vector<16x128xf32> to vector<16xf32>
    %19 = vector.shape_cast %18 : vector<16xf32> to vector<16x1xf32>
    %cst_9 = arith.constant 3.125000e-02 : f32
    %20 = vector.broadcast %cst_9 : f32 to vector<16x1xf32>
    %21 = arith.mulf %19, %20 : vector<16x1xf32>
    %22 = vector.broadcast %21 : vector<16x1xf32> to vector<16x128xf32>
    %23 = arith.subf %0, %22 : vector<16x128xf32>
    %24 = vector.broadcast %6 : vector<1x128xf32> to vector<16x128xf32>
    %25 = arith.mulf %23, %24 : vector<16x128xf32>
    %26 = arith.mulf %25, %25 : vector<16x128xf32>
    %cst_10 = arith.constant dense<0.000000e+00> : vector<16xf32>
    %27 = vector.multi_reduction <add>, %26, %cst_10 [1] : vector<16x128xf32> to vector<16xf32>
    %28 = vector.shape_cast %27 : vector<16xf32> to vector<16x1xf32>
    %cst_11 = arith.constant 3.125000e-02 : f32
    %29 = vector.broadcast %cst_11 : f32 to vector<16x1xf32>
    %30 = arith.mulf %28, %29 : vector<16x1xf32>
    %cst_12 = arith.constant 9.99999974E-6 : f32
    %31 = vector.broadcast %cst_12 : f32 to vector<16x1xf32>
    %32 = arith.addf %30, %31 : vector<16x1xf32>
    %33 = math.rsqrt %32 : vector<16x1xf32>
    %34 = vector.broadcast %33 : vector<16x1xf32> to vector<16x128xf32>
    %35 = arith.mulf %25, %34 : vector<16x128xf32>
    %36 = arith.mulf %15, %35 : vector<16x128xf32>
    %37 = arith.addf %36, %13 : vector<16x128xf32>
    %cst_13 = arith.constant 2.000000e-01 : f32
    %38 = vector.broadcast %cst_13 : f32 to vector<16x128xf32>
    %39 = arith.mulf %38, %37 : vector<16x128xf32>
    %40 = arith.maximumf %37, %39 : vector<16x128xf32>
    %41 = arith.truncf %40 : vector<16x128xf32> to vector<16x128xbf16>
    %c0_14 = arith.constant 0 : index
    %c0_15 = arith.constant 0 : index
    %42 = vector.load %arg5[%c0_14, %c0_15] : memref<128x128xbf16, #tpu.memory_space<vmem>>, vector<128x128xbf16>
    %cst_16 = arith.constant dense<0.000000e+00> : vector<16x128xf32>
    %43 = tpu.matmul %41, %42, %cst_16 {dimension_numbers = #tpu.dot_dimension_numbers<[1], [0], [0], [1], [0, 0, 1, 1], [], []>} : vector<16x128xbf16>, vector<128x128xbf16>, vector<16x128xf32> -> vector<16x128xf32>
    %c0_17 = arith.constant 0 : index
    %c0_18 = arith.constant 0 : index
    %44 = vector.load %arg6[%c0_17, %c0_18] : memref<1x128xf32, #tpu.memory_space<vmem>>, vector<1x128xf32>
    %45 = vector.broadcast %44 : vector<1x128xf32> to vector<16x128xf32>
    %46 = arith.addf %43, %45 : vector<16x128xf32>
    %cst_19 = arith.constant 2.000000e-01 : f32
    %47 = vector.broadcast %cst_19 : f32 to vector<16x128xf32>
    %48 = arith.mulf %47, %46 : vector<16x128xf32>
    %49 = arith.maximumf %46, %48 : vector<16x128xf32>
    %c0_20 = arith.constant 0 : index
    %c256 = arith.constant 256 : index
    %50 = vector.load %arg3[%c0_20, %c256] : memref<128x512xbf16, #tpu.memory_space<vmem>>, vector<128x256xbf16>
    %cst_21 = arith.constant dense<0.000000e+00> : vector<16x256xf32>
    %51 = tpu.matmul %1, %50, %cst_21 {dimension_numbers = #tpu.dot_dimension_numbers<[1], [0], [0], [1], [0, 0, 1, 1], [], []>} : vector<16x128xbf16>, vector<128x256xbf16>, vector<16x256xf32> -> vector<16x256xf32>
    %c0_22 = arith.constant 0 : index
    %c256_23 = arith.constant 256 : index
    %52 = vector.load %arg4[%c0_22, %c256_23] : memref<1x512xf32, #tpu.memory_space<vmem>>, vector<1x256xf32>
    %53 = vector.broadcast %52 : vector<1x256xf32> to vector<16x256xf32>
    %54 = arith.addf %51, %53 : vector<16x256xf32>
    %55 = vector.extract_strided_slice %54 {offsets = [0, 0], sizes = [16, 128], strides = [1, 1]} : vector<16x256xf32> to vector<16x128xf32>
    %56 = vector.extract_strided_slice %54 {offsets = [0, 128], sizes = [16, 128], strides = [1, 1]} : vector<16x256xf32> to vector<16x128xf32>
    %cst_24 = arith.constant 1.000000e+00 : f32
    %57 = vector.broadcast %cst_24 : f32 to vector<16x128xf32>
    %58 = arith.addf %57, %55 : vector<16x128xf32>
    %59 = vector.broadcast %6 : vector<1x128xf32> to vector<16x128xf32>
    %60 = arith.mulf %49, %59 : vector<16x128xf32>
    %cst_25 = arith.constant dense<0.000000e+00> : vector<16xf32>
    %61 = vector.multi_reduction <add>, %60, %cst_25 [1] : vector<16x128xf32> to vector<16xf32>
    %62 = vector.shape_cast %61 : vector<16xf32> to vector<16x1xf32>
    %cst_26 = arith.constant 3.125000e-02 : f32
    %63 = vector.broadcast %cst_26 : f32 to vector<16x1xf32>
    %64 = arith.mulf %62, %63 : vector<16x1xf32>
    %65 = vector.broadcast %64 : vector<16x1xf32> to vector<16x128xf32>
    %66 = arith.subf %49, %65 : vector<16x128xf32>
    %67 = vector.broadcast %6 : vector<1x128xf32> to vector<16x128xf32>
    %68 = arith.mulf %66, %67 : vector<16x128xf32>
    %69 = arith.mulf %68, %68 : vector<16x128xf32>
    %cst_27 = arith.constant dense<0.000000e+00> : vector<16xf32>
    %70 = vector.multi_reduction <add>, %69, %cst_27 [1] : vector<16x128xf32> to vector<16xf32>
    %71 = vector.shape_cast %70 : vector<16xf32> to vector<16x1xf32>
    %cst_28 = arith.constant 3.125000e-02 : f32
    %72 = vector.broadcast %cst_28 : f32 to vector<16x1xf32>
    %73 = arith.mulf %71, %72 : vector<16x1xf32>
    %cst_29 = arith.constant 9.99999974E-6 : f32
    %74 = vector.broadcast %cst_29 : f32 to vector<16x1xf32>
    %75 = arith.addf %73, %74 : vector<16x1xf32>
    %76 = math.rsqrt %75 : vector<16x1xf32>
    %77 = vector.broadcast %76 : vector<16x1xf32> to vector<16x128xf32>
    %78 = arith.mulf %68, %77 : vector<16x128xf32>
    %79 = arith.mulf %58, %78 : vector<16x128xf32>
    %80 = arith.addf %79, %56 : vector<16x128xf32>
    %cst_30 = arith.constant 2.000000e-01 : f32
    %81 = vector.broadcast %cst_30 : f32 to vector<16x128xf32>
    %82 = arith.mulf %81, %80 : vector<16x128xf32>
    %83 = arith.maximumf %80, %82 : vector<16x128xf32>
    %84 = arith.truncf %83 : vector<16x128xf32> to vector<16x128xbf16>
    %c0_31 = arith.constant 0 : index
    %c0_32 = arith.constant 0 : index
    %85 = vector.load %arg7[%c0_31, %c0_32] : memref<128x128xbf16, #tpu.memory_space<vmem>>, vector<128x128xbf16>
    %cst_33 = arith.constant dense<0.000000e+00> : vector<16x128xf32>
    %86 = tpu.matmul %84, %85, %cst_33 {dimension_numbers = #tpu.dot_dimension_numbers<[1], [0], [0], [1], [0, 0, 1, 1], [], []>} : vector<16x128xbf16>, vector<128x128xbf16>, vector<16x128xf32> -> vector<16x128xf32>
    %c0_34 = arith.constant 0 : index
    %c0_35 = arith.constant 0 : index
    %87 = vector.load %arg8[%c0_34, %c0_35] : memref<1x128xf32, #tpu.memory_space<vmem>>, vector<1x128xf32>
    %88 = vector.broadcast %87 : vector<1x128xf32> to vector<16x128xf32>
    %89 = arith.addf %86, %88 : vector<16x128xf32>
    %cst_36 = arith.constant 0.000000e+00 : f32
    %90 = vector.broadcast %cst_36 : f32 to vector<16x128xf32>
    %91 = arith.maximumf %89, %90 : vector<16x128xf32>
    %c0_37 = arith.constant 0 : index
    %c0_38 = arith.constant 0 : index
    %92 = vector.load %arg9[%c0_37, %c0_38] : memref<16x128xf32, #tpu.memory_space<vmem>>, vector<16x128xf32>
    tpu.vector_store %arg9[%c0_37, %c0_38], %91 {strides = array<i32>} : memref<16x128xf32, #tpu.memory_space<vmem>>, vector<16x128xf32>,
    return
  }
  func.func @transform_0(%arg0: i32) -> (i32, i32) {
    %c0_i32 = arith.constant 0 : i32
    %c0_i32_0 = arith.constant 0 : i32
    return %arg0, %c0_i32 : i32, i32
  }
  func.func @transform_1(%arg0: i32) -> (i32, i32) {
    %c0_i32 = arith.constant 0 : i32
    %c0_i32_0 = arith.constant 0 : i32
    return %arg0, %c0_i32 : i32, i32
  }
  func.func @transform_2(%arg0: i32) -> (i32, i32) {
    %c0_i32 = arith.constant 0 : i32
    %c0_i32_0 = arith.constant 0 : i32
    %c0_i32_1 = arith.constant 0 : i32
    return %c0_i32, %c0_i32_0 : i32, i32
  }
  func.func @transform_3(%arg0: i32) -> (i32, i32) {
    %c0_i32 = arith.constant 0 : i32
    %c0_i32_0 = arith.constant 0 : i32
    %c0_i32_1 = arith.constant 0 : i32
    return %c0_i32, %c0_i32_0 : i32, i32
  }
  func.func @transform_4(%arg0: i32) -> (i32, i32) {
    %c0_i32 = arith.constant 0 : i32
    %c0_i32_0 = arith.constant 0 : i32
    %c0_i32_1 = arith.constant 0 : i32
    return %c0_i32, %c0_i32_0 : i32, i32
  }
  func.func @transform_5(%arg0: i32) -> (i32, i32) {
    %c0_i32 = arith.constant 0 : i32
    %c0_i32_0 = arith.constant 0 : i32
    %c0_i32_1 = arith.constant 0 : i32
    return %c0_i32, %c0_i32_0 : i32, i32
  }
  func.func @transform_6(%arg0: i32) -> (i32, i32) {
    %c0_i32 = arith.constant 0 : i32
    %c0_i32_0 = arith.constant 0 : i32
    %c0_i32_1 = arith.constant 0 : i32
    return %c0_i32, %c0_i32_0 : i32, i32
  }
  func.func @transform_7(%arg0: i32) -> (i32, i32) {
    %c0_i32 = arith.constant 0 : i32
    %c0_i32_0 = arith.constant 0 : i32
    %c0_i32_1 = arith.constant 0 : i32
    return %c0_i32, %c0_i32_0 : i32, i32
  }
  func.func @transform_8(%arg0: i32) -> (i32, i32) {
    %c0_i32 = arith.constant 0 : i32
    %c0_i32_0 = arith.constant 0 : i32
    return %arg0, %c0_i32 : i32, i32
  }
}

module attributes {stable_mosaic.version = 11 : i64} {
  func.func @kernel(%arg0: i32, %arg1: memref<16x128xf32, #tpu.memory_space<vmem>>, %arg2: memref<16x128xbf16, #tpu.memory_space<vmem>>, %arg3: memref<128x512xbf16, #tpu.memory_space<vmem>>, %arg4: memref<1x512xf32, #tpu.memory_space<vmem>>, %arg5: memref<128x128xbf16, #tpu.memory_space<vmem>>, %arg6: memref<1x128xf32, #tpu.memory_space<vmem>>, %arg7: memref<128x128xbf16, #tpu.memory_space<vmem>>, %arg8: memref<1x128xf32, #tpu.memory_space<vmem>>, %arg9: memref<16x128xf32, #tpu.memory_space<vmem>>) attributes {dimension_semantics = [#tpu.dimension_semantics<parallel>], iteration_bounds = array<i64: 1>, scalar_prefetch = 0 : i64, scratch_operands = 0 : i64, tpu.core_type = #tpu.core_type<tc>, window_params = [{transform_indices = @transform_0, window_bounds = array<i64: 16, 128>}, {transform_indices = @transform_1, window_bounds = array<i64: 16, 128>}, {pipeline_mode = #tpu.pipeline_mode<synchronous>, transform_indices = @transform_2, window_bounds = array<i64: 128, 512>}, {pipeline_mode = #tpu.pipeline_mode<synchronous>, transform_indices = @transform_3, window_bounds = array<i64: 1, 512>}, {pipeline_mode = #tpu.pipeline_mode<synchronous>, transform_indices = @transform_4, window_bounds = array<i64: 128, 128>}, {pipeline_mode = #tpu.pipeline_mode<synchronous>, transform_indices = @transform_5, window_bounds = array<i64: 1, 128>}, {pipeline_mode = #tpu.pipeline_mode<synchronous>, transform_indices = @transform_6, window_bounds = array<i64: 128, 128>}, {pipeline_mode = #tpu.pipeline_mode<synchronous>, transform_indices = @transform_7, window_bounds = array<i64: 1, 128>}, {transform_indices = @transform_8, window_bounds = array<i64: 16, 128>}]} {
    %c0 = arith.constant 0 : index
    %c0_0 = arith.constant 0 : index
    %0 = vector.load %arg1[%c0, %c0_0] : memref<16x128xf32, #tpu.memory_space<vmem>>, vector<16x128xf32>
    %c0_1 = arith.constant 0 : index
    %c0_2 = arith.constant 0 : index
    %1 = vector.load %arg2[%c0_1, %c0_2] : memref<16x128xbf16, #tpu.memory_space<vmem>>, vector<16x128xbf16>
    %2 = tpu.iota {dimensions = array<i32: 1>} : vector<1x128xi32>
    %c32_i32 = arith.constant 32 : i32
    %3 = vector.broadcast %c32_i32 : i32 to vector<1x128xi32>
    %4 = arith.cmpi slt, %2, %3 : vector<1x128xi32>
    %5 = arith.extui %4 : vector<1x128xi1> to vector<1x128xi32>
    %6 = arith.sitofp %5 : vector<1x128xi32> to vector<1x128xf32>
    %c0_3 = arith.constant 0 : index
    %c0_4 = arith.constant 0 : index
    %7 = vector.load %arg3[%c0_3, %c0_4] : memref<128x512xbf16, #tpu.memory_space<vmem>>, vector<128x256xbf16>
    %cst = arith.constant dense<0.000000e+00> : vector<16x256xf32>
    %8 = tpu.matmul %1, %7, %cst {dimension_numbers = #tpu.dot_dimension_numbers<[1], [0], [0], [1], [0, 0, 1, 1], [], []>} : vector<16x128xbf16>, vector<128x256xbf16>, vector<16x256xf32> -> vector<16x256xf32>
    %c0_5 = arith.constant 0 : index
    %c0_6 = arith.constant 0 : index
    %9 = vector.load %arg4[%c0_5, %c0_6] : memref<1x512xf32, #tpu.memory_space<vmem>>, vector<1x256xf32>
    %10 = vector.broadcast %9 : vector<1x256xf32> to vector<16x256xf32>
    %11 = arith.addf %8, %10 : vector<16x256xf32>
    %12 = vector.extract_strided_slice %11 {offsets = [0, 0], sizes = [16, 128], strides = [1, 1]} : vector<16x256xf32> to vector<16x128xf32>
    %13 = vector.extract_strided_slice %11 {offsets = [0, 128], sizes = [16, 128], strides = [1, 1]} : vector<16x256xf32> to vector<16x128xf32>
    %cst_7 = arith.constant 1.000000e+00 : f32
    %14 = vector.broadcast %cst_7 : f32 to vector<16x128xf32>
    %15 = arith.addf %14, %12 : vector<16x128xf32>
    %16 = vector.broadcast %6 : vector<1x128xf32> to vector<16x128xf32>
    %17 = arith.mulf %0, %16 : vector<16x128xf32>
    %cst_8 = arith.constant dense<0.000000e+00> : vector<16xf32>
    %18 = vector.multi_reduction <add>, %17, %cst_8 [1] : vector<16x128xf32> to vector<16xf32>
    %19 = vector.shape_cast %18 : vector<16xf32> to vector<16x1xf32>
    %cst_9 = arith.constant 3.125000e-02 : f32
    %20 = vector.broadcast %cst_9 : f32 to vector<16x1xf32>
    %21 = arith.mulf %19, %20 : vector<16x1xf32>
    %22 = vector.broadcast %21 : vector<16x1xf32> to vector<16x128xf32>
    %23 = arith.subf %0, %22 : vector<16x128xf32>
    %24 = vector.broadcast %6 : vector<1x128xf32> to vector<16x128xf32>
    %25 = arith.mulf %23, %24 : vector<16x128xf32>
    %26 = arith.mulf %25, %25 : vector<16x128xf32>
    %cst_10 = arith.constant dense<0.000000e+00> : vector<16xf32>
    %27 = vector.multi_reduction <add>, %26, %cst_10 [1] : vector<16x128xf32> to vector<16xf32>
    %28 = vector.shape_cast %27 : vector<16xf32> to vector<16x1xf32>
    %cst_11 = arith.constant 3.125000e-02 : f32
    %29 = vector.broadcast %cst_11 : f32 to vector<16x1xf32>
    %30 = arith.mulf %28, %29 : vector<16x1xf32>
    %cst_12 = arith.constant 9.99999974E-6 : f32
    %31 = vector.broadcast %cst_12 : f32 to vector<16x1xf32>
    %32 = arith.addf %30, %31 : vector<16x1xf32>
    %33 = math.rsqrt %32 : vector<16x1xf32>
    %34 = vector.broadcast %33 : vector<16x1xf32> to vector<16x128xf32>
    %35 = arith.mulf %25, %34 : vector<16x128xf32>
    %36 = arith.mulf %15, %35 : vector<16x128xf32>
    %37 = arith.addf %36, %13 : vector<16x128xf32>
    %cst_13 = arith.constant 2.000000e-01 : f32
    %38 = vector.broadcast %cst_13 : f32 to vector<16x128xf32>
    %39 = arith.mulf %38, %37 : vector<16x128xf32>
    %40 = arith.maximumf %37, %39 : vector<16x128xf32>
    %41 = arith.truncf %40 : vector<16x128xf32> to vector<16x128xbf16>
    %c0_14 = arith.constant 0 : index
    %c0_15 = arith.constant 0 : index
    %42 = vector.load %arg5[%c0_14, %c0_15] : memref<128x128xbf16, #tpu.memory_space<vmem>>, vector<128x128xbf16>
    %cst_16 = arith.constant dense<0.000000e+00> : vector<16x128xf32>
    %43 = tpu.matmul %41, %42, %cst_16 {dimension_numbers = #tpu.dot_dimension_numbers<[1], [0], [0], [1], [0, 0, 1, 1], [], []>} : vector<16x128xbf16>, vector<128x128xbf16>, vector<16x128xf32> -> vector<16x128xf32>
    %c0_17 = arith.constant 0 : index
    %c0_18 = arith.constant 0 : index
    %44 = vector.load %arg6[%c0_17, %c0_18] : memref<1x128xf32, #tpu.memory_space<vmem>>, vector<1x128xf32>
    %45 = vector.broadcast %44 : vector<1x128xf32> to vector<16x128xf32>
    %46 = arith.addf %43, %45 : vector<16x128xf32>
    %cst_19 = arith.constant 2.000000e-01 : f32
    %47 = vector.broadcast %cst_19 : f32 to vector<16x128xf32>
    %48 = arith.mulf %47, %46 : vector<16x128xf32>
    %49 = arith.maximumf %46, %48 : vector<16x128xf32>
    %c0_20 = arith.constant 0 : index
    %c256 = arith.constant 256 : index
    %50 = vector.load %arg3[%c0_20, %c256] : memref<128x512xbf16, #tpu.memory_space<vmem>>, vector<128x256xbf16>
    %cst_21 = arith.constant dense<0.000000e+00> : vector<16x256xf32>
    %51 = tpu.matmul %1, %50, %cst_21 {dimension_numbers = #tpu.dot_dimension_numbers<[1], [0], [0], [1], [0, 0, 1, 1], [], []>} : vector<16x128xbf16>, vector<128x256xbf16>, vector<16x256xf32> -> vector<16x256xf32>
    %c0_22 = arith.constant 0 : index
    %c256_23 = arith.constant 256 : index
    %52 = vector.load %arg4[%c0_22, %c256_23] : memref<1x512xf32, #tpu.memory_space<vmem>>, vector<1x256xf32>
    %53 = vector.broadcast %52 : vector<1x256xf32> to vector<16x256xf32>
    %54 = arith.addf %51, %53 : vector<16x256xf32>
    %55 = vector.extract_strided_slice %54 {offsets = [0, 0], sizes = [16, 128], strides = [1, 1]} : vector<16x256xf32> to vector<16x128xf32>
    %56 = vector.extract_strided_slice %54 {offsets = [0, 128], sizes = [16, 128], strides = [1, 1]} : vector<16x256xf32> to vector<16x128xf32>
    %cst_24 = arith.constant 1.000000e+00 : f32
    %57 = vector.broadcast %cst_24 : f32 to vector<16x128xf32>
    %58 = arith.addf %57, %55 : vector<16x128xf32>
    %59 = vector.broadcast %6 : vector<1x128xf32> to vector<16x128xf32>
    %60 = arith.mulf %49, %59 : vector<16x128xf32>
    %cst_25 = arith.constant dense<0.000000e+00> : vector<16xf32>
    %61 = vector.multi_reduction <add>, %60, %cst_25 [1] : vector<16x128xf32> to vector<16xf32>
    %62 = vector.shape_cast %61 : vector<16xf32> to vector<16x1xf32>
    %cst_26 = arith.constant 3.125000e-02 : f32
    %63 = vector.broadcast %cst_26 : f32 to vector<16x1xf32>
    %64 = arith.mulf %62, %63 : vector<16x1xf32>
    %65 = vector.broadcast %64 : vector<16x1xf32> to vector<16x128xf32>
    %66 = arith.subf %49, %65 : vector<16x128xf32>
    %67 = vector.broadcast %6 : vector<1x128xf32> to vector<16x128xf32>
    %68 = arith.mulf %66, %67 : vector<16x128xf32>
    %69 = arith.mulf %68, %68 : vector<16x128xf32>
    %cst_27 = arith.constant dense<0.000000e+00> : vector<16xf32>
    %70 = vector.multi_reduction <add>, %69, %cst_27 [1] : vector<16x128xf32> to vector<16xf32>
    %71 = vector.shape_cast %70 : vector<16xf32> to vector<16x1xf32>
    %cst_28 = arith.constant 3.125000e-02 : f32
    %72 = vector.broadcast %cst_28 : f32 to vector<16x1xf32>
    %73 = arith.mulf %71, %72 : vector<16x1xf32>
    %cst_29 = arith.constant 9.99999974E-6 : f32
    %74 = vector.broadcast %cst_29 : f32 to vector<16x1xf32>
    %75 = arith.addf %73, %74 : vector<16x1xf32>
    %76 = math.rsqrt %75 : vector<16x1xf32>
    %77 = vector.broadcast %76 : vector<16x1xf32> to vector<16x128xf32>
    %78 = arith.mulf %68, %77 : vector<16x128xf32>
    %79 = arith.mulf %58, %78 : vector<16x128xf32>
    %80 = arith.addf %79, %56 : vector<16x128xf32>
    %cst_30 = arith.constant 2.000000e-01 : f32
    %81 = vector.broadcast %cst_30 : f32 to vector<16x128xf32>
    %82 = arith.mulf %81, %80 : vector<16x128xf32>
    %83 = arith.maximumf %80, %82 : vector<16x128xf32>
    %84 = arith.truncf %83 : vector<16x128xf32> to vector<16x128xbf16>
    %c0_31 = arith.constant 0 : index
    %c0_32 = arith.constant 0 : index
    %85 = vector.load %arg7[%c0_31, %c0_32] : memref<128x128xbf16, #tpu.memory_space<vmem>>, vector<128x128xbf16>
    %cst_33 = arith.constant dense<0.000000e+00> : vector<16x128xf32>
    %86 = tpu.matmul %84, %85, %cst_33 {dimension_numbers = #tpu.dot_dimension_numbers<[1], [0], [0], [1], [0, 0, 1, 1], [], []>} : vector<16x128xbf16>, vector<128x128xbf16>, vector<16x128xf32> -> vector<16x128xf32>
    %c0_34 = arith.constant 0 : index
    %c0_35 = arith.constant 0 : index
    %87 = vector.load %arg8[%c0_34, %c0_35] : memref<1x128xf32, #tpu.memory_space<vmem>>, vector<1x128xf32>
    %88 = vector.broadcast %87 : vector<1x128xf32> to vector<16x128xf32>
    %89 = arith.addf %86, %88 : vector<16x128xf32>
    %cst_36 = arith.constant 0.000000e+00 : f32
    %90 = vector.broadcast %cst_36 : f32 to vector<16x128xf32>
    %91 = arith.maximumf %89, %90 : vector<16x128xf32>
    %c0_37 = arith.constant 0 : index
    %c0_38 = arith.constant 0 : index
    %92 = vector.load %arg9[%c0_37, %c0_38] : memref<16x128xf32, #tpu.memory_space<vmem>>, vector<16x128xf32>
    tpu.vector_store %arg9[%c0_37, %c0_38], %91 {strides = array<i32>} : memref<16x128xf32, #tpu.memory_space<vmem>>, vector<16x128xf32>,
    return
  }
  func.func @transform_0(%arg0: i32) -> (i32, i32) {
    %c0_i32 = arith.constant 0 : i32
    %c0_i32_0 = arith.constant 0 : i32
    return %arg0, %c0_i32 : i32, i32
  }
  func.func @transform_1(%arg0: i32) -> (i32, i32) {
    %c0_i32 = arith.constant 0 : i32
    %c0_i32_0 = arith.constant 0 : i32
    return %arg0, %c0_i32 : i32, i32
  }
  func.func @transform_2(%arg0: i32) -> (i32, i32) {
    %c0_i32 = arith.constant 0 : i32
    %c0_i32_0 = arith.constant 0 : i32
    %c0_i32_1 = arith.constant 0 : i32
    return %c0_i32, %c0_i32_0 : i32, i32
  }
  func.func @transform_3(%arg0: i32) -> (i32, i32) {
    %c0_i32 = arith.constant 0 : i32
    %c0_i32_0 = arith.constant 0 : i32
    %c0_i32_1 = arith.constant 0 : i32
    return %c0_i32, %c0_i32_0 : i32, i32
  }
  func.func @transform_4(%arg0: i32) -> (i32, i32) {
    %c0_i32 = arith.constant 0 : i32
    %c0_i32_0 = arith.constant 0 : i32
    %c0_i32_1 = arith.constant 0 : i32
    return %c0_i32, %c0_i32_0 : i32, i32
  }
  func.func @transform_5(%arg0: i32) -> (i32, i32) {
    %c0_i32 = arith.constant 0 : i32
    %c0_i32_0 = arith.constant 0 : i32
    %c0_i32_1 = arith.constant 0 : i32
    return %c0_i32, %c0_i32_0 : i32, i32
  }
  func.func @transform_6(%arg0: i32) -> (i32, i32) {
    %c0_i32 = arith.constant 0 : i32
    %c0_i32_0 = arith.constant 0 : i32
    %c0_i32_1 = arith.constant 0 : i32
    return %c0_i32, %c0_i32_0 : i32, i32
  }
  func.func @transform_7(%arg0: i32) -> (i32, i32) {
    %c0_i32 = arith.constant 0 : i32
    %c0_i32_0 = arith.constant 0 : i32
    %c0_i32_1 = arith.constant 0 : i32
    return %c0_i32, %c0_i32_0 : i32, i32
  }
  func.func @transform_8(%arg0: i32) -> (i32, i32) {
    %c0_i32 = arith.constant 0 : i32
    %c0_i32_0 = arith.constant 0 : i32
    return %arg0, %c0_i32 : i32, i32
  }
}

</mosaic_0001>

<llo_original>
// kernel: tpu_custom_call.1
$region0: #{tpu_custom_call.1}
  #allocation0 [shape = 'u32[]', space=smem, size = 0x4, offset = 0x4, fixed_abs, tag = 'smem constant byte address 0x4 - core index']
  #allocation1 [shape = 'u32[144,128]{1,0:T(1,128)}', space=vmem, size = 0x12000, scoped, tag = 'internal scratch']
  %s0 = inlined_call_operand.hbm [shape: f32[16,128], index: 0, kind: input, shape index: {}]
  %s1 = inlined_call_operand.hbm [shape: bf16[16,128], index: 1, kind: input, shape index: {}]
  %s2 = inlined_call_operand.hbm [shape: bf16[128,512], index: 2, kind: input, shape index: {}]
  %s3 = inlined_call_operand.vmem [shape: f32[1,512], index: 3, kind: input, shape index: {}]
  %s4 = inlined_call_operand.hbm [shape: bf16[128,128], index: 4, kind: input, shape index: {}]
  %s5 = inlined_call_operand.vmem [shape: f32[1,128], index: 5, kind: input, shape index: {}]
  %s6 = inlined_call_operand.hbm [shape: bf16[128,128], index: 6, kind: input, shape index: {}]
  %s7 = inlined_call_operand.vmem [shape: f32[1,128], index: 7, kind: input, shape index: {}]
  %s8 = inlined_call_operand.hbm [shape: f32[16,128], index: 8, kind: output, shape index: {}]
  %s9 = sld [smem:[#allocation0]]
  $region62: #{tpu_custom_call.1} parent=0
    _
  %s11 = ssub.s32 1, %s9
  %s12 = scalar_select 0, %s11, %s9
  $region1: #{tpu_custom_call.1} parent=0
    #allocation2 [shape = 'u8[8192]{0}', space=vmem, size = 0x2000, scoped, tag = 'input window, operand 0, single buffered']
    #allocation3 [shape = 's32[1]{0}', space=sflag, size = 0x4, scoped, tag = 'scoped memory for tpu_custom_call.1']
    #allocation4 [shape = 's32[1]{0}', space=sflag, size = 0x4, scoped, tag = 'scoped memory for tpu_custom_call.1']
    #allocation5 [shape = 'u8[4096]{0}', space=vmem, size = 0x1000, scoped, tag = 'input window, operand 1, single buffered']
    #allocation6 [shape = 's32[1]{0}', space=sflag, size = 0x4, scoped, tag = 'scoped memory for tpu_custom_call.1']
    #allocation7 [shape = 'u8[131072]{0}', space=vmem, size = 0x20000, scoped, tag = 'input window, operand 2, single buffered']
    #allocation8 [shape = 'u8[32768]{0}', space=vmem, size = 0x8000, scoped, tag = 'input window, operand 4, single buffered']
    #allocation9 [shape = 's32[1]{0}', space=sflag, size = 0x4, scoped, tag = 'scoped memory for tpu_custom_call.1']
    #allocation10 [shape = 'u8[32768]{0}', space=vmem, size = 0x8000, scoped, tag = 'input window, operand 6, single buffered']
    #allocation11 [shape = 'u8[8192]{0}', space=vmem, size = 0x2000, scoped, tag = 'output window, operand 0, single buffered']
    %13 = vsyncpa [#allocation3], 0
    %14 = vsyncpa [#allocation6], 0
    %15 = vsyncpa [#allocation9], 0
    %16 = vsyncpa [#allocation4], 0
    // Predicated region
    $region2: #{tpu_custom_call.1} parent=1 // pred_check
      _
    $region3: #{tpu_custom_call.1} parent=1 // pred_check_branch
      %18 = sbr.rel (0) target = $region5
    $region4: #{tpu_custom_call.1} parent=1 // pred_region
      %s20 = ssub.s32 256, 256
      %21 = vsyncadd [#allocation3], %s20
      %s22 = sshll.u32 [#allocation2], 4
      %s23 = int_to_ptr.vmem [resolvable:$true] %s22
      %28 = dma.hbm_to_vmem [thread:$0]  %s0, 256, %s23, [#allocation3], 128, 128, 8
    $region5: #{tpu_custom_call.1} parent=1 // pred_fallthru
      _
    // Predicated region
    $region6: #{tpu_custom_call.1} parent=1 // pred_check
      _
    $region7: #{tpu_custom_call.1} parent=1 // pred_check_branch
      %30 = sbr.rel (0) target = $region9
    $region8: #{tpu_custom_call.1} parent=1 // pred_region
      %s32 = ssub.s32 128, 128
      %33 = vsyncadd [#allocation6], %s32
      %s34 = sshll.u32 [#allocation5], 4
      %s35 = int_to_ptr.vmem [resolvable:$true] %s34
      %40 = dma.hbm_to_vmem [thread:$0]  %s1, 128, %s35, [#allocation6], 64, 64, 4
    $region9: #{tpu_custom_call.1} parent=1 // pred_fallthru
      _
    // Predicated region
    $region10: #{tpu_custom_call.1} parent=1 // pred_check
      _
    $region11: #{tpu_custom_call.1} parent=1 // pred_check_branch
      %42 = sbr.rel (0) target = $region13
    $region12: #{tpu_custom_call.1} parent=1 // pred_region
      %s44 = ssub.s32 4096, 4096
      %45 = vsyncadd [#allocation6], %s44
      %s46 = sshll.u32 [#allocation7], 4
      %s47 = int_to_ptr.vmem [resolvable:$true] %s46
      %52 = dma.hbm_to_vmem [thread:$0]  %s2, 4096, %s47, [#allocation6], 256, 256, 16
    $region13: #{tpu_custom_call.1} parent=1 // pred_fallthru
      _
    // Predicated region
    $region14: #{tpu_custom_call.1} parent=1 // pred_check
      _
    $region15: #{tpu_custom_call.1} parent=1 // pred_check_branch
      %54 = sbr.rel (0) target = $region17
    $region16: #{tpu_custom_call.1} parent=1 // pred_region
      _
    $region17: #{tpu_custom_call.1} parent=1 // pred_fallthru
      _
    // Predicated region
    $region18: #{tpu_custom_call.1} parent=1 // pred_check
      _
    $region19: #{tpu_custom_call.1} parent=1 // pred_check_branch
      %56 = sbr.rel (0) target = $region21
    $region20: #{tpu_custom_call.1} parent=1 // pred_region
      %s58 = ssub.s32 1024, 1024
      %59 = vsyncadd [#allocation9], %s58
      %s60 = sshll.u32 [#allocation8], 4
      %s61 = int_to_ptr.vmem [resolvable:$true] %s60
      %66 = dma.hbm_to_vmem [thread:$0]  %s4, 1024, %s61, [#allocation9], 64, 64, 4
    $region21: #{tpu_custom_call.1} parent=1 // pred_fallthru
      _
    // Predicated region
    $region22: #{tpu_custom_call.1} parent=1 // pred_check
      _
    $region23: #{tpu_custom_call.1} parent=1 // pred_check_branch
      %68 = sbr.rel (0) target = $region25
    $region24: #{tpu_custom_call.1} parent=1 // pred_region
      _
    $region25: #{tpu_custom_call.1} parent=1 // pred_fallthru
      _
    // Predicated region
    $region26: #{tpu_custom_call.1} parent=1 // pred_check
      _
    $region27: #{tpu_custom_call.1} parent=1 // pred_check_branch
      %70 = sbr.rel (0) target = $region29
    $region28: #{tpu_custom_call.1} parent=1 // pred_region
      %s72 = ssub.s32 1024, 1024
      %73 = vsyncadd [#allocation9], %s72
      %s74 = sshll.u32 [#allocation10], 4
      %s75 = int_to_ptr.vmem [resolvable:$true] %s74
      %80 = dma.hbm_to_vmem [thread:$0]  %s6, 1024, %s75, [#allocation9], 64, 64, 4
    $region29: #{tpu_custom_call.1} parent=1 // pred_fallthru
      _
    // Predicated region
    $region30: #{tpu_custom_call.1} parent=1 // pred_check
      _
    $region31: #{tpu_custom_call.1} parent=1 // pred_check_branch
      %82 = sbr.rel (0) target = $region33
    $region32: #{tpu_custom_call.1} parent=1 // pred_region
      _
    $region33: #{tpu_custom_call.1} parent=1 // pred_fallthru
      _
    // Predicated region
    $region34: #{tpu_custom_call.1} parent=1 // pred_check
      _
    $region35: #{tpu_custom_call.1} parent=1 // pred_check_branch
      %84 = sbr.rel (0) target = $region37
    $region36: #{tpu_custom_call.1} parent=1 // pred_region
      %85 = dma.done [#allocation3], 256
    $region37: #{tpu_custom_call.1} parent=1 // pred_fallthru
      _
    // Predicated region
    $region38: #{tpu_custom_call.1} parent=1 // pred_check
      _
    $region39: #{tpu_custom_call.1} parent=1 // pred_check_branch
      %87 = sbr.rel (0) target = $region41
    $region40: #{tpu_custom_call.1} parent=1 // pred_region
      %88 = dma.done [#allocation6], 128
    $region41: #{tpu_custom_call.1} parent=1 // pred_fallthru
      _
    // Predicated region
    $region42: #{tpu_custom_call.1} parent=1 // pred_check
      _
    $region43: #{tpu_custom_call.1} parent=1 // pred_check_branch
      %90 = sbr.rel (0) target = $region45
    $region44: #{tpu_custom_call.1} parent=1 // pred_region
      %91 = dma.done [#allocation6], 4096
    $region45: #{tpu_custom_call.1} parent=1 // pred_fallthru
      _
    // Predicated region
    $region46: #{tpu_custom_call.1} parent=1 // pred_check
      _
    $region47: #{tpu_custom_call.1} parent=1 // pred_check_branch
      %93 = sbr.rel (0) target = $region49
    $region48: #{tpu_custom_call.1} parent=1 // pred_region
      %94 = dma.done [#allocation9], 1024
    $region49: #{tpu_custom_call.1} parent=1 // pred_fallthru
      _
    // Predicated region
    $region50: #{tpu_custom_call.1} parent=1 // pred_check
      _
    $region51: #{tpu_custom_call.1} parent=1 // pred_check_branch
      %96 = sbr.rel (0) target = $region53
    $region52: #{tpu_custom_call.1} parent=1 // pred_region
      %97 = dma.done [#allocation9], 1024
    $region53: #{tpu_custom_call.1} parent=1 // pred_fallthru
      _
    %v99 = vld [vmem:[#allocation2] sm:$0xff]
    %v100 = vld [vmem:[#allocation2 + $0x8] sm:$0xff]
    %v101 = vld [vmem:[#allocation5] sm:$0xf]
    %v102 = vld [vmem:[#allocation5 + $0x4] sm:$0xf]
    %v103 = vlaneseq
    %v104 = vand.u32 %v103, 127
    %vm105 = vcmp.lt.s32.totalorder %v104, 32
    %v106 = vsel %vm105, 1, 0
    %v107 = vcvt.s32.f32 %v106
    %v108 = vld [vmem:[#allocation7] sm:$0xff]
    %v109 = vld [vmem:[#allocation7 + $0x10] sm:$0xff]
    %v110 = vld [vmem:[#allocation7 + $0x20] sm:$0xff]
    %v111 = vld [vmem:[#allocation7 + $0x30] sm:$0xff]
    %v112 = vld [vmem:[#allocation7 + $0x40] sm:$0xff]
    %v113 = vld [vmem:[#allocation7 + $0x50] sm:$0xff]
    %v114 = vld [vmem:[#allocation7 + $0x60] sm:$0xff]
    %v115 = vld [vmem:[#allocation7 + $0x70] sm:$0xff]
    %v116 = vld [vmem:[#allocation7 + $0x80] sm:$0xff]
    %v117 = vld [vmem:[#allocation7 + $0x90] sm:$0xff]
    %v118 = vld [vmem:[#allocation7 + $0xa0] sm:$0xff]
    %v119 = vld [vmem:[#allocation7 + $0xb0] sm:$0xff]
    %v120 = vld [vmem:[#allocation7 + $0xc0] sm:$0xff]
    %v121 = vld [vmem:[#allocation7 + $0xd0] sm:$0xff]
    %v122 = vld [vmem:[#allocation7 + $0xe0] sm:$0xff]
    %v123 = vld [vmem:[#allocation7 + $0xf0] sm:$0xff]
    %v124 = vld [vmem:[%s3] sm:$0x3]
    %v126 = vlaneseq
    %v127 = vshrl.u32 %v126, 7
    %v128 = vsub.s32 0, %v127
    %v129 = vrot.slane %v124, %v128
    %v130 = vlaneseq
    %v131 = vshrl.u32 %v130, 7
    %v132 = vsub.s32 1, %v131
    %v133 = vrot.slane %v124, %v132
    %v138 = vunpack.c.l.b16 %v101
    %v139 = vunpack.c.l.b16 %v102
    %v140 = vpack.c.b16 %v139, %v138
    %v158 = vunpack.c.l.b16 %v108
    %v159 = vunpack.c.h.b16 %v108
    %v160 = vunpack.c.l.b16 %v109
    %v161 = vunpack.c.h.b16 %v109
    %v162 = vunpack.c.l.b16 %v110
    %v163 = vunpack.c.h.b16 %v110
    %v164 = vunpack.c.l.b16 %v111
    %v165 = vunpack.c.h.b16 %v111
    %v166 = vunpack.c.l.b16 %v112
    %v167 = vunpack.c.h.b16 %v112
    %v168 = vunpack.c.l.b16 %v113
    %v169 = vunpack.c.h.b16 %v113
    %v170 = vunpack.c.l.b16 %v114
    %v171 = vunpack.c.h.b16 %v114
    %v172 = vunpack.c.l.b16 %v115
    %v173 = vunpack.c.h.b16 %v115
    %v174 = vunpack.c.l.b16 %v116
    %v175 = vunpack.c.h.b16 %v116
    %v176 = vunpack.c.l.b16 %v117
    %v177 = vunpack.c.h.b16 %v117
    %v178 = vunpack.c.l.b16 %v118
    %v179 = vunpack.c.h.b16 %v118
    %v180 = vunpack.c.l.b16 %v119
    %v181 = vunpack.c.h.b16 %v119
    %v182 = vunpack.c.l.b16 %v120
    %v183 = vunpack.c.h.b16 %v120
    %v184 = vunpack.c.l.b16 %v121
    %v185 = vunpack.c.h.b16 %v121
    %v186 = vunpack.c.l.b16 %v122
    %v187 = vunpack.c.h.b16 %v122
    %v188 = vunpack.c.l.b16 %v123
    %v189 = vunpack.c.h.b16 %v123
    %v190 = vpack.c.b16 %v160, %v158
    %v191 = vpack.c.b16 %v161, %v159
    %v192 = vpack.c.b16 %v164, %v162
    %v193 = vpack.c.b16 %v165, %v163
    %v194 = vpack.c.b16 %v168, %v166
    %v195 = vpack.c.b16 %v169, %v167
    %v196 = vpack.c.b16 %v172, %v170
    %v197 = vpack.c.b16 %v173, %v171
    %v198 = vpack.c.b16 %v176, %v174
    %v199 = vpack.c.b16 %v177, %v175
    %v200 = vpack.c.b16 %v180, %v178
    %v201 = vpack.c.b16 %v181, %v179
    %v202 = vpack.c.b16 %v184, %v182
    %v203 = vpack.c.b16 %v185, %v183
    %v204 = vpack.c.b16 %v188, %v186
    %v205 = vpack.c.b16 %v189, %v187
    %222 = vmatprep.subr.bf16.mxu0 %v191
    %223 = vmatpush1.bf16.msra.mxu0 %v190
    %224 = vmatprep.subr.bf16.mxu0 %v193
    %225 = vmatpush1.bf16.msra.mxu0 %v192
    %226 = vmatprep.subr.bf16.mxu0 %v195
    %227 = vmatpush1.bf16.msra.mxu0 %v194
    %228 = vmatprep.subr.bf16.mxu0 %v197
    %229 = vmatpush1.bf16.msra.mxu0 %v196
    %230 = vmatprep.subr.bf16.mxu0 %v199
    %231 = vmatpush1.bf16.msra.mxu0 %v198
    %232 = vmatprep.subr.bf16.mxu0 %v201
    %233 = vmatpush1.bf16.msra.mxu0 %v200
    %234 = vmatprep.subr.bf16.mxu0 %v203
    %235 = vmatpush1.bf16.msra.mxu0 %v202
    %236 = vmatprep.subr.bf16.mxu0 %v205
    %237 = vmatpush1.bf16.msra.mxu0 %v204
    %238 = vmatprep.subr.bf16.mxu0 0
    %239 = vmatpush1.bf16.msra.mxu0 0
    %240 = vmatprep.subr.bf16.mxu0 0
    %241 = vmatpush1.bf16.msra.mxu0 0
    %242 = vmatprep.subr.bf16.mxu0 0
    %243 = vmatpush1.bf16.msra.mxu0 0
    %244 = vmatprep.subr.bf16.mxu0 0
    %245 = vmatpush1.bf16.msra.mxu0 0
    %246 = vmatprep.subr.bf16.mxu0 0
    %247 = vmatpush1.bf16.msra.mxu0 0
    %248 = vmatprep.subr.bf16.mxu0 0
    %249 = vmatpush1.bf16.msra.mxu0 0
    %250 = vmatprep.subr.bf16.mxu0 0
    %251 = vmatpush1.bf16.msra.mxu0 0
    %252 = vmatprep.subr.bf16.mxu0 0
    %253 = vmatpush1.bf16.msra.mxu0 0
    %254 = vmatprep.mubr.bf16.mxu0 0
    %255 = vmatmul.mubr.bf16.gmra.mrb[0].mxu0 %v140
    %v256 = vpop.f32.mrb[0].mxu0
    %v257 = vadd.f32 %v129, %v256
    %v258 = vpop.f32.mrb[0].mxu0
    %v259 = vadd.f32 %v133, %v258
    %v260 = vpop.f32.mrb[0].mxu0
    %v261 = vadd.f32 %v129, %v260
    %v262 = vpop.f32.mrb[0].mxu0
    %v263 = vadd.f32 %v133, %v262
    %264 = vdwg.mxu0
    %v265 = vadd.f32 %v257, 1.0
    %v266 = vadd.f32 %v261, 1.0
    %v267 = vmul.f32 %v99, %v107
    %v268 = vmul.f32 %v100, %v107
    %269 = vadd.xlane.f32.xlu0 %v267
    %v270 = vpop.xlane.xlu0 %269
    %271 = vadd.xlane.f32.xlu0 %v268
    %v272 = vpop.xlane.xlu0 %271
    %v273 = vmul.f32 %v270, 0.03125
    %v274 = vmul.f32 %v272, 0.03125
    %v275 = vsub.f32 %v99, %v273
    %v276 = vsub.f32 %v100, %v274
    %v277 = vmul.f32 %v275, %v107
    %v278 = vmul.f32 %v276, %v107
    %v279 = vmul.f32 %v277, %v277
    %v280 = vmul.f32 %v278, %v278
    %281 = vadd.xlane.f32.xlu0 %v279
    %v282 = vpop.xlane.xlu0 %281
    %283 = vadd.xlane.f32.xlu0 %v280
    %v284 = vpop.xlane.xlu0 %283
    %v285 = vmul.f32 %v282, 0.03125
    %v286 = vmul.f32 %v284, 0.03125
    %v287 = vadd.f32 %v285, 1e-05
    %v288 = vadd.f32 %v286, 1e-05
    %v289 = vrsqrt.pop %v287
    %v290 = vrsqrt.pop %v288
    %v291 = vmul.f32 %v277, %v289
    %v292 = vmul.f32 %v278, %v290
    %v293 = vmul.f32 %v265, %v291
    %v294 = vmul.f32 %v266, %v292
    %v295 = vadd.f32 %v293, %v259
    %v296 = vadd.f32 %v294, %v263
    %v297 = vmul.f32 %v295, 0.2
    %v298 = vmul.f32 %v296, 0.2
    %v299 = vmax.f32 %v295, %v297
    %v300 = vmax.f32 %v296, %v298
    %v301 = vpack.c.bf16 %v300, %v299
    %v302 = vld [vmem:[#allocation8] sm:$0xf]
    %v303 = vld [vmem:[#allocation8 + $0x4] sm:$0xf]
    %v304 = vld [vmem:[#allocation8 + $0x8] sm:$0xf]
    %v305 = vld [vmem:[#allocation8 + $0xc] sm:$0xf]
    %v306 = vld [vmem:[#allocation8 + $0x10] sm:$0xf]
    %v307 = vld [vmem:[#allocation8 + $0x14] sm:$0xf]
    %v308 = vld [vmem:[#allocation8 + $0x18] sm:$0xf]
    %v309 = vld [vmem:[#allocation8 + $0x1c] sm:$0xf]
    %v310 = vld [vmem:[#allocation8 + $0x20] sm:$0xf]
    %v311 = vld [vmem:[#allocation8 + $0x24] sm:$0xf]
    %v312 = vld [vmem:[#allocation8 + $0x28] sm:$0xf]
    %v313 = vld [vmem:[#allocation8 + $0x2c] sm:$0xf]
    %v314 = vld [vmem:[#allocation8 + $0x30] sm:$0xf]
    %v315 = vld [vmem:[#allocation8 + $0x34] sm:$0xf]
    %v316 = vld [vmem:[#allocation8 + $0x38] sm:$0xf]
    %v317 = vld [vmem:[#allocation8 + $0x3c] sm:$0xf]
    %v318 = vld [vmem:[%s5] sm:$0x1]
    %v320 = vlaneseq
    %v321 = vshrl.u32 %v320, 7
    %v322 = vsub.s32 0, %v321
    %v323 = vrot.slane %v318, %v322
    %v341 = vunpack.c.l.b16 %v302
    %v342 = vunpack.c.l.b16 %v303
    %v343 = vunpack.c.l.b16 %v304
    %v344 = vunpack.c.l.b16 %v305
    %v345 = vunpack.c.l.b16 %v306
    %v346 = vunpack.c.l.b16 %v307
    %v347 = vunpack.c.l.b16 %v308
    %v348 = vunpack.c.l.b16 %v309
    %v349 = vunpack.c.l.b16 %v310
    %v350 = vunpack.c.l.b16 %v311
    %v351 = vunpack.c.l.b16 %v312
    %v352 = vunpack.c.l.b16 %v313
    %v353 = vunpack.c.l.b16 %v314
    %v354 = vunpack.c.l.b16 %v315
    %v355 = vunpack.c.l.b16 %v316
    %v356 = vunpack.c.l.b16 %v317
    %v357 = vpack.c.b16 %v342, %v341
    %v358 = vpack.c.b16 %v344, %v343
    %v359 = vpack.c.b16 %v346, %v345
    %v360 = vpack.c.b16 %v348, %v347
    %v361 = vpack.c.b16 %v350, %v349
    %v362 = vpack.c.b16 %v352, %v351
    %v363 = vpack.c.b16 %v354, %v353
    %v364 = vpack.c.b16 %v356, %v355
    %373 = vmatprep.subr.bf16.mxu0 0
    %374 = vmatpush1.bf16.msra.mxu0 %v357
    %375 = vmatprep.subr.bf16.mxu0 0
    %376 = vmatpush1.bf16.msra.mxu0 %v358
    %377 = vmatprep.subr.bf16.mxu0 0
    %378 = vmatpush1.bf16.msra.mxu0 %v359
    %379 = vmatprep.subr.bf16.mxu0 0
    %380 = vmatpush1.bf16.msra.mxu0 %v360
    %381 = vmatprep.subr.bf16.mxu0 0
    %382 = vmatpush1.bf16.msra.mxu0 %v361
    %383 = vmatprep.subr.bf16.mxu0 0
    %384 = vmatpush1.bf16.msra.mxu0 %v362
    %385 = vmatprep.subr.bf16.mxu0 0
    %386 = vmatpush1.bf16.msra.mxu0 %v363
    %387 = vmatprep.subr.bf16.mxu0 0
    %388 = vmatpush1.bf16.msra.mxu0 %v364
    %389 = vmatprep.subr.bf16.mxu0 0
    %390 = vmatpush1.bf16.msra.mxu0 0
    %391 = vmatprep.subr.bf16.mxu0 0
    %392 = vmatpush1.bf16.msra.mxu0 0
    %393 = vmatprep.subr.bf16.mxu0 0
    %394 = vmatpush1.bf16.msra.mxu0 0
    %395 = vmatprep.subr.bf16.mxu0 0
    %396 = vmatpush1.bf16.msra.mxu0 0
    %397 = vmatprep.subr.bf16.mxu0 0
    %398 = vmatpush1.bf16.msra.mxu0 0
    %399 = vmatprep.subr.bf16.mxu0 0
    %400 = vmatpush1.bf16.msra.mxu0 0
    %401 = vmatprep.subr.bf16.mxu0 0
    %402 = vmatpush1.bf16.msra.mxu0 0
    %403 = vmatprep.subr.bf16.mxu0 0
    %404 = vmatpush1.bf16.msra.mxu0 0
    %405 = vmatprep.mubr.bf16.mxu0 0
    %406 = vmatmul.mubr.bf16.gmra.mrb[0].mxu0 %v301
    %v407 = vpop.f32.mrb[0].mxu0
    %v408 = vadd.f32 %v323, %v407
    %v409 = vpop.f32.mrb[0].mxu0
    %v410 = vpop.f32.mrb[0].mxu0
    %v411 = vadd.f32 %v323, %v410
    %v412 = vpop.f32.mrb[0].mxu0
    %413 = vdwg.mxu0
    %v414 = vmul.f32 %v408, 0.2
    %v415 = vmul.f32 %v411, 0.2
    %v416 = vmax.f32 %v408, %v414
    %v417 = vmax.f32 %v411, %v415
    %v418 = vld [vmem:[#allocation7 + $0x8] sm:$0xff]
    %v419 = vld [vmem:[#allocation7 + $0x18] sm:$0xff]
    %v420 = vld [vmem:[#allocation7 + $0x28] sm:$0xff]
    %v421 = vld [vmem:[#allocation7 + $0x38] sm:$0xff]
    %v422 = vld [vmem:[#allocation7 + $0x48] sm:$0xff]
    %v423 = vld [vmem:[#allocation7 + $0x58] sm:$0xff]
    %v424 = vld [vmem:[#allocation7 + $0x68] sm:$0xff]
    %v425 = vld [vmem:[#allocation7 + $0x78] sm:$0xff]
    %v426 = vld [vmem:[#allocation7 + $0x88] sm:$0xff]
    %v427 = vld [vmem:[#allocation7 + $0x98] sm:$0xff]
    %v428 = vld [vmem:[#allocation7 + $0xa8] sm:$0xff]
    %v429 = vld [vmem:[#allocation7 + $0xb8] sm:$0xff]
    %v430 = vld [vmem:[#allocation7 + $0xc8] sm:$0xff]
    %v431 = vld [vmem:[#allocation7 + $0xd8] sm:$0xff]
    %v432 = vld [vmem:[#allocation7 + $0xe8] sm:$0xff]
    %v433 = vld [vmem:[#allocation7 + $0xf8] sm:$0xff]
    %v434 = vld [vmem:[%s3 + $0x2] sm:$0x3]
    %v436 = vlaneseq
    %v437 = vshrl.u32 %v436, 7
    %v438 = vsub.s32 0, %v437
    %v439 = vrot.slane %v434, %v438
    %v440 = vlaneseq
    %v441 = vshrl.u32 %v440, 7
    %v442 = vsub.s32 1, %v441
    %v443 = vrot.slane %v434, %v442
    %v462 = vunpack.c.l.b16 %v418
    %v463 = vunpack.c.h.b16 %v418
    %v464 = vunpack.c.l.b16 %v419
    %v465 = vunpack.c.h.b16 %v419
    %v466 = vunpack.c.l.b16 %v420
    %v467 = vunpack.c.h.b16 %v420
    %v468 = vunpack.c.l.b16 %v421
    %v469 = vunpack.c.h.b16 %v421
    %v470 = vunpack.c.l.b16 %v422
    %v471 = vunpack.c.h.b16 %v422
    %v472 = vunpack.c.l.b16 %v423
    %v473 = vunpack.c.h.b16 %v423
    %v474 = vunpack.c.l.b16 %v424
    %v475 = vunpack.c.h.b16 %v424
    %v476 = vunpack.c.l.b16 %v425
    %v477 = vunpack.c.h.b16 %v425
    %v478 = vunpack.c.l.b16 %v426
    %v479 = vunpack.c.h.b16 %v426
    %v480 = vunpack.c.l.b16 %v427
    %v481 = vunpack.c.h.b16 %v427
    %v482 = vunpack.c.l.b16 %v428
    %v483 = vunpack.c.h.b16 %v428
    %v484 = vunpack.c.l.b16 %v429
    %v485 = vunpack.c.h.b16 %v429
    %v486 = vunpack.c.l.b16 %v430
    %v487 = vunpack.c.h.b16 %v430
    %v488 = vunpack.c.l.b16 %v431
    %v489 = vunpack.c.h.b16 %v431
    %v490 = vunpack.c.l.b16 %v432
    %v491 = vunpack.c.h.b16 %v432
    %v492 = vunpack.c.l.b16 %v433
    %v493 = vunpack.c.h.b16 %v433
    %v494 = vpack.c.b16 %v464, %v462
    %v495 = vpack.c.b16 %v465, %v463
    %v496 = vpack.c.b16 %v468, %v466
    %v497 = vpack.c.b16 %v469, %v467
    %v498 = vpack.c.b16 %v472, %v470
    %v499 = vpack.c.b16 %v473, %v471
    %v500 = vpack.c.b16 %v476, %v474
    %v501 = vpack.c.b16 %v477, %v475
    %v502 = vpack.c.b16 %v480, %v478
    %v503 = vpack.c.b16 %v481, %v479
    %v504 = vpack.c.b16 %v484, %v482
    %v505 = vpack.c.b16 %v485, %v483
    %v506 = vpack.c.b16 %v488, %v486
    %v507 = vpack.c.b16 %v489, %v487
    %v508 = vpack.c.b16 %v492, %v490
    %v509 = vpack.c.b16 %v493, %v491
    %526 = vmatprep.subr.bf16.mxu0 %v495
    %527 = vmatpush1.bf16.msra.mxu0 %v494
    %528 = vmatprep.subr.bf16.mxu0 %v497
    %529 = vmatpush1.bf16.msra.mxu0 %v496
    %530 = vmatprep.subr.bf16.mxu0 %v499
    %531 = vmatpush1.bf16.msra.mxu0 %v498
    %532 = vmatprep.subr.bf16.mxu0 %v501
    %533 = vmatpush1.bf16.msra.mxu0 %v500
    %534 = vmatprep.subr.bf16.mxu0 %v503
    %535 = vmatpush1.bf16.msra.mxu0 %v502
    %536 = vmatprep.subr.bf16.mxu0 %v505
    %537 = vmatpush1.bf16.msra.mxu0 %v504
    %538 = vmatprep.subr.bf16.mxu0 %v507
    %539 = vmatpush1.bf16.msra.mxu0 %v506
    %540 = vmatprep.subr.bf16.mxu0 %v509
    %541 = vmatpush1.bf16.msra.mxu0 %v508
    %542 = vmatprep.subr.bf16.mxu0 0
    %543 = vmatpush1.bf16.msra.mxu0 0
    %544 = vmatprep.subr.bf16.mxu0 0
    %545 = vmatpush1.bf16.msra.mxu0 0
    %546 = vmatprep.subr.bf16.mxu0 0
    %547 = vmatpush1.bf16.msra.mxu0 0
    %548 = vmatprep.subr.bf16.mxu0 0
    %549 = vmatpush1.bf16.msra.mxu0 0
    %550 = vmatprep.subr.bf16.mxu0 0
    %551 = vmatpush1.bf16.msra.mxu0 0
    %552 = vmatprep.subr.bf16.mxu0 0
    %553 = vmatpush1.bf16.msra.mxu0 0
    %554 = vmatprep.subr.bf16.mxu0 0
    %555 = vmatpush1.bf16.msra.mxu0 0
    %556 = vmatprep.subr.bf16.mxu0 0
    %557 = vmatpush1.bf16.msra.mxu0 0
    %558 = vmatprep.mubr.bf16.mxu0 0
    %559 = vmatmul.mubr.bf16.gmra.mrb[0].mxu0 %v140
    %v560 = vpop.f32.mrb[0].mxu0
    %v561 = vadd.f32 %v439, %v560
    %v562 = vpop.f32.mrb[0].mxu0
    %v563 = vadd.f32 %v443, %v562
    %v564 = vpop.f32.mrb[0].mxu0
    %v565 = vadd.f32 %v439, %v564
    %v566 = vpop.f32.mrb[0].mxu0
    %v567 = vadd.f32 %v443, %v566
    %568 = vdwg.mxu0
    %v569 = vadd.f32 %v561, 1.0
    %v570 = vadd.f32 %v565, 1.0
    %v571 = vmul.f32 %v416, %v107
    %v572 = vmul.f32 %v417, %v107
    %573 = vadd.xlane.f32.xlu0 %v571
    %v574 = vpop.xlane.xlu0 %573
    %575 = vadd.xlane.f32.xlu0 %v572
    %v576 = vpop.xlane.xlu0 %575
    %v577 = vmul.f32 %v574, 0.03125
    %v578 = vmul.f32 %v576, 0.03125
    %v579 = vsub.f32 %v416, %v577
    %v580 = vsub.f32 %v417, %v578
    %v581 = vmul.f32 %v579, %v107
    %v582 = vmul.f32 %v580, %v107
    %v583 = vmul.f32 %v581, %v581
    %v584 = vmul.f32 %v582, %v582
    %585 = vadd.xlane.f32.xlu0 %v583
    %v586 = vpop.xlane.xlu0 %585
    %587 = vadd.xlane.f32.xlu0 %v584
    %v588 = vpop.xlane.xlu0 %587
    %v589 = vmul.f32 %v586, 0.03125
    %v590 = vmul.f32 %v588, 0.03125
    %v591 = vadd.f32 %v589, 1e-05
    %v592 = vadd.f32 %v590, 1e-05
    %v593 = vrsqrt.pop %v591
    %v594 = vrsqrt.pop %v592
    %v595 = vmul.f32 %v581, %v593
    %v596 = vmul.f32 %v582, %v594
    %v597 = vmul.f32 %v569, %v595
    %v598 = vmul.f32 %v570, %v596
    %v599 = vadd.f32 %v597, %v563
    %v600 = vadd.f32 %v598, %v567
    %v601 = vmul.f32 %v599, 0.2
    %v602 = vmul.f32 %v600, 0.2
    %v603 = vmax.f32 %v599, %v601
    %v604 = vmax.f32 %v600, %v602
    %v605 = vpack.c.bf16 %v604, %v603
    %v606 = vld [vmem:[#allocation10] sm:$0xf]
    %v607 = vld [vmem:[#allocation10 + $0x4] sm:$0xf]
    %v608 = vld [vmem:[#allocation10 + $0x8] sm:$0xf]
    %v609 = vld [vmem:[#allocation10 + $0xc] sm:$0xf]
    %v610 = vld [vmem:[#allocation10 + $0x10] sm:$0xf]
    %v611 = vld [vmem:[#allocation10 + $0x14] sm:$0xf]
    %v612 = vld [vmem:[#allocation10 + $0x18] sm:$0xf]
    %v613 = vld [vmem:[#allocation10 + $0x1c] sm:$0xf]
    %v614 = vld [vmem:[#allocation10 + $0x20] sm:$0xf]
    %v615 = vld [vmem:[#allocation10 + $0x24] sm:$0xf]
    %v616 = vld [vmem:[#allocation10 + $0x28] sm:$0xf]
    %v617 = vld [vmem:[#allocation10 + $0x2c] sm:$0xf]
    %v618 = vld [vmem:[#allocation10 + $0x30] sm:$0xf]
    %v619 = vld [vmem:[#allocation10 + $0x34] sm:$0xf]
    %v620 = vld [vmem:[#allocation10 + $0x38] sm:$0xf]
    %v621 = vld [vmem:[#allocation10 + $0x3c] sm:$0xf]
    %v622 = vld [vmem:[%s7] sm:$0x1]
    %v624 = vlaneseq
    %v625 = vshrl.u32 %v624, 7
    %v626 = vsub.s32 0, %v625
    %v627 = vrot.slane %v622, %v626
    %v645 = vunpack.c.l.b16 %v606
    %v646 = vunpack.c.l.b16 %v607
    %v647 = vunpack.c.l.b16 %v608
    %v648 = vunpack.c.l.b16 %v609
    %v649 = vunpack.c.l.b16 %v610
    %v650 = vunpack.c.l.b16 %v611
    %v651 = vunpack.c.l.b16 %v612
    %v652 = vunpack.c.l.b16 %v613
    %v653 = vunpack.c.l.b16 %v614
    %v654 = vunpack.c.l.b16 %v615
    %v655 = vunpack.c.l.b16 %v616
    %v656 = vunpack.c.l.b16 %v617
    %v657 = vunpack.c.l.b16 %v618
    %v658 = vunpack.c.l.b16 %v619
    %v659 = vunpack.c.l.b16 %v620
    %v660 = vunpack.c.l.b16 %v621
    %v661 = vpack.c.b16 %v646, %v645
    %v662 = vpack.c.b16 %v648, %v647
    %v663 = vpack.c.b16 %v650, %v649
    %v664 = vpack.c.b16 %v652, %v651
    %v665 = vpack.c.b16 %v654, %v653
    %v666 = vpack.c.b16 %v656, %v655
    %v667 = vpack.c.b16 %v658, %v657
    %v668 = vpack.c.b16 %v660, %v659
    %677 = vmatprep.subr.bf16.mxu0 0
    %678 = vmatpush1.bf16.msra.mxu0 %v661
    %679 = vmatprep.subr.bf16.mxu0 0
    %680 = vmatpush1.bf16.msra.mxu0 %v662
    %681 = vmatprep.subr.bf16.mxu0 0
    %682 = vmatpush1.bf16.msra.mxu0 %v663
    %683 = vmatprep.subr.bf16.mxu0 0
    %684 = vmatpush1.bf16.msra.mxu0 %v664
    %685 = vmatprep.subr.bf16.mxu0 0
    %686 = vmatpush1.bf16.msra.mxu0 %v665
    %687 = vmatprep.subr.bf16.mxu0 0
    %688 = vmatpush1.bf16.msra.mxu0 %v666
    %689 = vmatprep.subr.bf16.mxu0 0
    %690 = vmatpush1.bf16.msra.mxu0 %v667
    %691 = vmatprep.subr.bf16.mxu0 0
    %692 = vmatpush1.bf16.msra.mxu0 %v668
    %693 = vmatprep.subr.bf16.mxu0 0
    %694 = vmatpush1.bf16.msra.mxu0 0
    %695 = vmatprep.subr.bf16.mxu0 0
    %696 = vmatpush1.bf16.msra.mxu0 0
    %697 = vmatprep.subr.bf16.mxu0 0
    %698 = vmatpush1.bf16.msra.mxu0 0
    %699 = vmatprep.subr.bf16.mxu0 0
    %700 = vmatpush1.bf16.msra.mxu0 0
    %701 = vmatprep.subr.bf16.mxu0 0
    %702 = vmatpush1.bf16.msra.mxu0 0
    %703 = vmatprep.subr.bf16.mxu0 0
    %704 = vmatpush1.bf16.msra.mxu0 0
    %705 = vmatprep.subr.bf16.mxu0 0
    %706 = vmatpush1.bf16.msra.mxu0 0
    %707 = vmatprep.subr.bf16.mxu0 0
    %708 = vmatpush1.bf16.msra.mxu0 0
    %709 = vmatprep.mubr.bf16.mxu0 0
    %710 = vmatmul.mubr.bf16.gmra.mrb[0].mxu0 %v605
    %v711 = vpop.f32.mrb[0].mxu0
    %v712 = vadd.f32 %v627, %v711
    %v713 = vpop.f32.mrb[0].mxu0
    %v714 = vpop.f32.mrb[0].mxu0
    %v715 = vadd.f32 %v627, %v714
    %v716 = vpop.f32.mrb[0].mxu0
    %717 = vdwg.mxu0
    %v718 = vmax.f32 %v712, 0.0
    %v719 = vmax.f32 %v715, 0.0
    %720 = vst [vmem:[#allocation11] sm:$0xff] %v718
    %721 = vst [vmem:[#allocation11 + $0x8] sm:$0xff] %v719
    // Predicated region
    $region54: #{tpu_custom_call.1} parent=1 // pred_check
      _
    $region55: #{tpu_custom_call.1} parent=1 // pred_check_branch
      %723 = sbr.rel (0) target = $region57
    $region56: #{tpu_custom_call.1} parent=1 // pred_region
      %s725 = ssub.s32 256, 256
      %726 = vsyncadd [#allocation4], %s725
      %s727 = sshll.u32 [#allocation11], 4
      %s728 = int_to_ptr.vmem [resolvable:$true] %s727
      %733 = dma.vmem_to_hbm [thread:$0]  %s728, 256, %s8, [#allocation4], 128, 128, 8
    $region57: #{tpu_custom_call.1} parent=1 // pred_fallthru
      _
    // Predicated region
    $region58: #{tpu_custom_call.1} parent=1 // pred_check
      _
    $region59: #{tpu_custom_call.1} parent=1 // pred_check_branch
      %735 = sbr.rel (0) target = $region61
    $region60: #{tpu_custom_call.1} parent=1 // pred_region
      %736 = dma.done [#allocation4], 256
    $region61: #{tpu_custom_call.1} parent=1 // pred_fallthru
      _
    %737 = vsyncpa [#allocation3], 1
    %738 = vsyncpa [#allocation6], 1
    %739 = vsyncpa [#allocation9], 1
    %740 = vsyncpa [#allocation4], 1

// kernel: tpu_custom_call.1
$region0: #{tpu_custom_call.1}
  #allocation0 [shape = 'u32[]', space=smem, size = 0x4, offset = 0x4, fixed_abs, tag = 'smem constant byte address 0x4 - core index']
  #allocation1 [shape = 'u32[144,128]{1,0:T(1,128)}', space=vmem, size = 0x12000, scoped, tag = 'internal scratch']
  %s0 = inlined_call_operand.hbm [shape: f32[16,128], index: 0, kind: input, shape index: {}]
  %s1 = inlined_call_operand.hbm [shape: bf16[16,128], index: 1, kind: input, shape index: {}]
  %s2 = inlined_call_operand.hbm [shape: bf16[128,512], index: 2, kind: input, shape index: {}]
  %s3 = inlined_call_operand.vmem [shape: f32[1,512], index: 3, kind: input, shape index: {}]
  %s4 = inlined_call_operand.hbm [shape: bf16[128,128], index: 4, kind: input, shape index: {}]
  %s5 = inlined_call_operand.vmem [shape: f32[1,128], index: 5, kind: input, shape index: {}]
  %s6 = inlined_call_operand.hbm [shape: bf16[128,128], index: 6, kind: input, shape index: {}]
  %s7 = inlined_call_operand.vmem [shape: f32[1,128], index: 7, kind: input, shape index: {}]
  %s8 = inlined_call_operand.hbm [shape: f32[16,128], index: 8, kind: output, shape index: {}]
  %s9 = sld [smem:[#allocation0]]
  $region62: #{tpu_custom_call.1} parent=0
    _
  %s11 = ssub.s32 1, %s9
  %s12 = scalar_select 0, %s11, %s9
  $region1: #{tpu_custom_call.1} parent=0
    #allocation2 [shape = 'u8[8192]{0}', space=vmem, size = 0x2000, scoped, tag = 'input window, operand 0, single buffered']
    #allocation3 [shape = 's32[1]{0}', space=sflag, size = 0x4, scoped, tag = 'scoped memory for tpu_custom_call.1']
    #allocation4 [shape = 's32[1]{0}', space=sflag, size = 0x4, scoped, tag = 'scoped memory for tpu_custom_call.1']
    #allocation5 [shape = 'u8[4096]{0}', space=vmem, size = 0x1000, scoped, tag = 'input window, operand 1, single buffered']
    #allocation6 [shape = 's32[1]{0}', space=sflag, size = 0x4, scoped, tag = 'scoped memory for tpu_custom_call.1']
    #allocation7 [shape = 'u8[131072]{0}', space=vmem, size = 0x20000, scoped, tag = 'input window, operand 2, single buffered']
    #allocation8 [shape = 'u8[32768]{0}', space=vmem, size = 0x8000, scoped, tag = 'input window, operand 4, single buffered']
    #allocation9 [shape = 's32[1]{0}', space=sflag, size = 0x4, scoped, tag = 'scoped memory for tpu_custom_call.1']
    #allocation10 [shape = 'u8[32768]{0}', space=vmem, size = 0x8000, scoped, tag = 'input window, operand 6, single buffered']
    #allocation11 [shape = 'u8[8192]{0}', space=vmem, size = 0x2000, scoped, tag = 'output window, operand 0, single buffered']
    %13 = vsyncpa [#allocation3], 0
    %14 = vsyncpa [#allocation6], 0
    %15 = vsyncpa [#allocation9], 0
    %16 = vsyncpa [#allocation4], 0
    // Predicated region
    $region2: #{tpu_custom_call.1} parent=1 // pred_check
      _
    $region3: #{tpu_custom_call.1} parent=1 // pred_check_branch
      %18 = sbr.rel (0) target = $region5
    $region4: #{tpu_custom_call.1} parent=1 // pred_region
      %s20 = ssub.s32 256, 256
      %21 = vsyncadd [#allocation3], %s20
      %s22 = sshll.u32 [#allocation2], 4
      %s23 = int_to_ptr.vmem [resolvable:$true] %s22
      %28 = dma.hbm_to_vmem [thread:$0]  %s0, 256, %s23, [#allocation3], 128, 128, 8
    $region5: #{tpu_custom_call.1} parent=1 // pred_fallthru
      _
    // Predicated region
    $region6: #{tpu_custom_call.1} parent=1 // pred_check
      _
    $region7: #{tpu_custom_call.1} parent=1 // pred_check_branch
      %30 = sbr.rel (0) target = $region9
    $region8: #{tpu_custom_call.1} parent=1 // pred_region
      %s32 = ssub.s32 128, 128
      %33 = vsyncadd [#allocation6], %s32
      %s34 = sshll.u32 [#allocation5], 4
      %s35 = int_to_ptr.vmem [resolvable:$true] %s34
      %40 = dma.hbm_to_vmem [thread:$0]  %s1, 128, %s35, [#allocation6], 64, 64, 4
    $region9: #{tpu_custom_call.1} parent=1 // pred_fallthru
      _
    // Predicated region
    $region10: #{tpu_custom_call.1} parent=1 // pred_check
      _
    $region11: #{tpu_custom_call.1} parent=1 // pred_check_branch
      %42 = sbr.rel (0) target = $region13
    $region12: #{tpu_custom_call.1} parent=1 // pred_region
      %s44 = ssub.s32 4096, 4096
      %45 = vsyncadd [#allocation6], %s44
      %s46 = sshll.u32 [#allocation7], 4
      %s47 = int_to_ptr.vmem [resolvable:$true] %s46
      %52 = dma.hbm_to_vmem [thread:$0]  %s2, 4096, %s47, [#allocation6], 256, 256, 16
    $region13: #{tpu_custom_call.1} parent=1 // pred_fallthru
      _
    // Predicated region
    $region14: #{tpu_custom_call.1} parent=1 // pred_check
      _
    $region15: #{tpu_custom_call.1} parent=1 // pred_check_branch
      %54 = sbr.rel (0) target = $region17
    $region16: #{tpu_custom_call.1} parent=1 // pred_region
      _
    $region17: #{tpu_custom_call.1} parent=1 // pred_fallthru
      _
    // Predicated region
    $region18: #{tpu_custom_call.1} parent=1 // pred_check
      _
    $region19: #{tpu_custom_call.1} parent=1 // pred_check_branch
      %56 = sbr.rel (0) target = $region21
    $region20: #{tpu_custom_call.1} parent=1 // pred_region
      %s58 = ssub.s32 1024, 1024
      %59 = vsyncadd [#allocation9], %s58
      %s60 = sshll.u32 [#allocation8], 4
      %s61 = int_to_ptr.vmem [resolvable:$true] %s60
      %66 = dma.hbm_to_vmem [thread:$0]  %s4, 1024, %s61, [#allocation9], 64, 64, 4
    $region21: #{tpu_custom_call.1} parent=1 // pred_fallthru
      _
    // Predicated region
    $region22: #{tpu_custom_call.1} parent=1 // pred_check
      _
    $region23: #{tpu_custom_call.1} parent=1 // pred_check_branch
      %68 = sbr.rel (0) target = $region25
    $region24: #{tpu_custom_call.1} parent=1 // pred_region
      _
    $region25: #{tpu_custom_call.1} parent=1 // pred_fallthru
      _
    // Predicated region
    $region26: #{tpu_custom_call.1} parent=1 // pred_check
      _
    $region27: #{tpu_custom_call.1} parent=1 // pred_check_branch
      %70 = sbr.rel (0) target = $region29
    $region28: #{tpu_custom_call.1} parent=1 // pred_region
      %s72 = ssub.s32 1024, 1024
      %73 = vsyncadd [#allocation9], %s72
      %s74 = sshll.u32 [#allocation10], 4
      %s75 = int_to_ptr.vmem [resolvable:$true] %s74
      %80 = dma.hbm_to_vmem [thread:$0]  %s6, 1024, %s75, [#allocation9], 64, 64, 4
    $region29: #{tpu_custom_call.1} parent=1 // pred_fallthru
      _
    // Predicated region
    $region30: #{tpu_custom_call.1} parent=1 // pred_check
      _
    $region31: #{tpu_custom_call.1} parent=1 // pred_check_branch
      %82 = sbr.rel (0) target = $region33
    $region32: #{tpu_custom_call.1} parent=1 // pred_region
      _
    $region33: #{tpu_custom_call.1} parent=1 // pred_fallthru
      _
    // Predicated region
    $region34: #{tpu_custom_call.1} parent=1 // pred_check
      _
    $region35: #{tpu_custom_call.1} parent=1 // pred_check_branch
      %84 = sbr.rel (0) target = $region37
    $region36: #{tpu_custom_call.1} parent=1 // pred_region
      %85 = dma.done [#allocation3], 256
    $region37: #{tpu_custom_call.1} parent=1 // pred_fallthru
      _
    // Predicated region
    $region38: #{tpu_custom_call.1} parent=1 // pred_check
      _
    $region39: #{tpu_custom_call.1} parent=1 // pred_check_branch
      %87 = sbr.rel (0) target = $region41
    $region40: #{tpu_custom_call.1} parent=1 // pred_region
      %88 = dma.done [#allocation6], 128
    $region41: #{tpu_custom_call.1} parent=1 // pred_fallthru
      _
    // Predicated region
    $region42: #{tpu_custom_call.1} parent=1 // pred_check
      _
    $region43: #{tpu_custom_call.1} parent=1 // pred_check_branch
      %90 = sbr.rel (0) target = $region45
    $region44: #{tpu_custom_call.1} parent=1 // pred_region
      %91 = dma.done [#allocation6], 4096
    $region45: #{tpu_custom_call.1} parent=1 // pred_fallthru
      _
    // Predicated region
    $region46: #{tpu_custom_call.1} parent=1 // pred_check
      _
    $region47: #{tpu_custom_call.1} parent=1 // pred_check_branch
      %93 = sbr.rel (0) target = $region49
    $region48: #{tpu_custom_call.1} parent=1 // pred_region
      %94 = dma.done [#allocation9], 1024
    $region49: #{tpu_custom_call.1} parent=1 // pred_fallthru
      _
    // Predicated region
    $region50: #{tpu_custom_call.1} parent=1 // pred_check
      _
    $region51: #{tpu_custom_call.1} parent=1 // pred_check_branch
      %96 = sbr.rel (0) target = $region53
    $region52: #{tpu_custom_call.1} parent=1 // pred_region
      %97 = dma.done [#allocation9], 1024
    $region53: #{tpu_custom_call.1} parent=1 // pred_fallthru
      _
    %v99 = vld [vmem:[#allocation2] sm:$0xff]
    %v100 = vld [vmem:[#allocation2 + $0x8] sm:$0xff]
    %v101 = vld [vmem:[#allocation5] sm:$0xf]
    %v102 = vld [vmem:[#allocation5 + $0x4] sm:$0xf]
    %v103 = vlaneseq
    %v104 = vand.u32 %v103, 127
    %vm105 = vcmp.lt.s32.totalorder %v104, 32
    %v106 = vsel %vm105, 1, 0
    %v107 = vcvt.s32.f32 %v106
    %v108 = vld [vmem:[#allocation7] sm:$0xff]
    %v109 = vld [vmem:[#allocation7 + $0x10] sm:$0xff]
    %v110 = vld [vmem:[#allocation7 + $0x20] sm:$0xff]
    %v111 = vld [vmem:[#allocation7 + $0x30] sm:$0xff]
    %v112 = vld [vmem:[#allocation7 + $0x40] sm:$0xff]
    %v113 = vld [vmem:[#allocation7 + $0x50] sm:$0xff]
    %v114 = vld [vmem:[#allocation7 + $0x60] sm:$0xff]
    %v115 = vld [vmem:[#allocation7 + $0x70] sm:$0xff]
    %v116 = vld [vmem:[#allocation7 + $0x80] sm:$0xff]
    %v117 = vld [vmem:[#allocation7 + $0x90] sm:$0xff]
    %v118 = vld [vmem:[#allocation7 + $0xa0] sm:$0xff]
    %v119 = vld [vmem:[#allocation7 + $0xb0] sm:$0xff]
    %v120 = vld [vmem:[#allocation7 + $0xc0] sm:$0xff]
    %v121 = vld [vmem:[#allocation7 + $0xd0] sm:$0xff]
    %v122 = vld [vmem:[#allocation7 + $0xe0] sm:$0xff]
    %v123 = vld [vmem:[#allocation7 + $0xf0] sm:$0xff]
    %v124 = vld [vmem:[%s3] sm:$0x3]
    %v126 = vlaneseq
    %v127 = vshrl.u32 %v126, 7
    %v128 = vsub.s32 0, %v127
    %v129 = vrot.slane %v124, %v128
    %v130 = vlaneseq
    %v131 = vshrl.u32 %v130, 7
    %v132 = vsub.s32 1, %v131
    %v133 = vrot.slane %v124, %v132
    %v138 = vunpack.c.l.b16 %v101
    %v139 = vunpack.c.l.b16 %v102
    %v140 = vpack.c.b16 %v139, %v138
    %v158 = vunpack.c.l.b16 %v108
    %v159 = vunpack.c.h.b16 %v108
    %v160 = vunpack.c.l.b16 %v109
    %v161 = vunpack.c.h.b16 %v109
    %v162 = vunpack.c.l.b16 %v110
    %v163 = vunpack.c.h.b16 %v110
    %v164 = vunpack.c.l.b16 %v111
    %v165 = vunpack.c.h.b16 %v111
    %v166 = vunpack.c.l.b16 %v112
    %v167 = vunpack.c.h.b16 %v112
    %v168 = vunpack.c.l.b16 %v113
    %v169 = vunpack.c.h.b16 %v113
    %v170 = vunpack.c.l.b16 %v114
    %v171 = vunpack.c.h.b16 %v114
    %v172 = vunpack.c.l.b16 %v115
    %v173 = vunpack.c.h.b16 %v115
    %v174 = vunpack.c.l.b16 %v116
    %v175 = vunpack.c.h.b16 %v116
    %v176 = vunpack.c.l.b16 %v117
    %v177 = vunpack.c.h.b16 %v117
    %v178 = vunpack.c.l.b16 %v118
    %v179 = vunpack.c.h.b16 %v118
    %v180 = vunpack.c.l.b16 %v119
    %v181 = vunpack.c.h.b16 %v119
    %v182 = vunpack.c.l.b16 %v120
    %v183 = vunpack.c.h.b16 %v120
    %v184 = vunpack.c.l.b16 %v121
    %v185 = vunpack.c.h.b16 %v121
    %v186 = vunpack.c.l.b16 %v122
    %v187 = vunpack.c.h.b16 %v122
    %v188 = vunpack.c.l.b16 %v123
    %v189 = vunpack.c.h.b16 %v123
    %v190 = vpack.c.b16 %v160, %v158
    %v191 = vpack.c.b16 %v161, %v159
    %v192 = vpack.c.b16 %v164, %v162
    %v193 = vpack.c.b16 %v165, %v163
    %v194 = vpack.c.b16 %v168, %v166
    %v195 = vpack.c.b16 %v169, %v167
    %v196 = vpack.c.b16 %v172, %v170
    %v197 = vpack.c.b16 %v173, %v171
    %v198 = vpack.c.b16 %v176, %v174
    %v199 = vpack.c.b16 %v177, %v175
    %v200 = vpack.c.b16 %v180, %v178
    %v201 = vpack.c.b16 %v181, %v179
    %v202 = vpack.c.b16 %v184, %v182
    %v203 = vpack.c.b16 %v185, %v183
    %v204 = vpack.c.b16 %v188, %v186
    %v205 = vpack.c.b16 %v189, %v187
    %222 = vmatprep.subr.bf16.mxu0 %v191
    %223 = vmatpush1.bf16.msra.mxu0 %v190
    %224 = vmatprep.subr.bf16.mxu0 %v193
    %225 = vmatpush1.bf16.msra.mxu0 %v192
    %226 = vmatprep.subr.bf16.mxu0 %v195
    %227 = vmatpush1.bf16.msra.mxu0 %v194
    %228 = vmatprep.subr.bf16.mxu0 %v197
    %229 = vmatpush1.bf16.msra.mxu0 %v196
    %230 = vmatprep.subr.bf16.mxu0 %v199
    %231 = vmatpush1.bf16.msra.mxu0 %v198
    %232 = vmatprep.subr.bf16.mxu0 %v201
    %233 = vmatpush1.bf16.msra.mxu0 %v200
    %234 = vmatprep.subr.bf16.mxu0 %v203
    %235 = vmatpush1.bf16.msra.mxu0 %v202
    %236 = vmatprep.subr.bf16.mxu0 %v205
    %237 = vmatpush1.bf16.msra.mxu0 %v204
    %238 = vmatprep.subr.bf16.mxu0 0
    %239 = vmatpush1.bf16.msra.mxu0 0
    %240 = vmatprep.subr.bf16.mxu0 0
    %241 = vmatpush1.bf16.msra.mxu0 0
    %242 = vmatprep.subr.bf16.mxu0 0
    %243 = vmatpush1.bf16.msra.mxu0 0
    %244 = vmatprep.subr.bf16.mxu0 0
    %245 = vmatpush1.bf16.msra.mxu0 0
    %246 = vmatprep.subr.bf16.mxu0 0
    %247 = vmatpush1.bf16.msra.mxu0 0
    %248 = vmatprep.subr.bf16.mxu0 0
    %249 = vmatpush1.bf16.msra.mxu0 0
    %250 = vmatprep.subr.bf16.mxu0 0
    %251 = vmatpush1.bf16.msra.mxu0 0
    %252 = vmatprep.subr.bf16.mxu0 0
    %253 = vmatpush1.bf16.msra.mxu0 0
    %254 = vmatprep.mubr.bf16.mxu0 0
    %255 = vmatmul.mubr.bf16.gmra.mrb[0].mxu0 %v140
    %v256 = vpop.f32.mrb[0].mxu0
    %v257 = vadd.f32 %v129, %v256
    %v258 = vpop.f32.mrb[0].mxu0
    %v259 = vadd.f32 %v133, %v258
    %v260 = vpop.f32.mrb[0].mxu0
    %v261 = vadd.f32 %v129, %v260
    %v262 = vpop.f32.mrb[0].mxu0
    %v263 = vadd.f32 %v133, %v262
    %264 = vdwg.mxu0
    %v265 = vadd.f32 %v257, 1.0
    %v266 = vadd.f32 %v261, 1.0
    %v267 = vmul.f32 %v99, %v107
    %v268 = vmul.f32 %v100, %v107
    %269 = vadd.xlane.f32.xlu0 %v267
    %v270 = vpop.xlane.xlu0 %269
    %271 = vadd.xlane.f32.xlu0 %v268
    %v272 = vpop.xlane.xlu0 %271
    %v273 = vmul.f32 %v270, 0.03125
    %v274 = vmul.f32 %v272, 0.03125
    %v275 = vsub.f32 %v99, %v273
    %v276 = vsub.f32 %v100, %v274
    %v277 = vmul.f32 %v275, %v107
    %v278 = vmul.f32 %v276, %v107
    %v279 = vmul.f32 %v277, %v277
    %v280 = vmul.f32 %v278, %v278
    %281 = vadd.xlane.f32.xlu0 %v279
    %v282 = vpop.xlane.xlu0 %281
    %283 = vadd.xlane.f32.xlu0 %v280
    %v284 = vpop.xlane.xlu0 %283
    %v285 = vmul.f32 %v282, 0.03125
    %v286 = vmul.f32 %v284, 0.03125
    %v287 = vadd.f32 %v285, 1e-05
    %v288 = vadd.f32 %v286, 1e-05
    %v289 = vrsqrt.pop %v287
    %v290 = vrsqrt.pop %v288
    %v291 = vmul.f32 %v277, %v289
    %v292 = vmul.f32 %v278, %v290
    %v293 = vmul.f32 %v265, %v291
    %v294 = vmul.f32 %v266, %v292
    %v295 = vadd.f32 %v293, %v259
    %v296 = vadd.f32 %v294, %v263
    %v297 = vmul.f32 %v295, 0.2
    %v298 = vmul.f32 %v296, 0.2
    %v299 = vmax.f32 %v295, %v297
    %v300 = vmax.f32 %v296, %v298
    %v301 = vpack.c.bf16 %v300, %v299
    %v302 = vld [vmem:[#allocation8] sm:$0xf]
    %v303 = vld [vmem:[#allocation8 + $0x4] sm:$0xf]
    %v304 = vld [vmem:[#allocation8 + $0x8] sm:$0xf]
    %v305 = vld [vmem:[#allocation8 + $0xc] sm:$0xf]
    %v306 = vld [vmem:[#allocation8 + $0x10] sm:$0xf]
    %v307 = vld [vmem:[#allocation8 + $0x14] sm:$0xf]
    %v308 = vld [vmem:[#allocation8 + $0x18] sm:$0xf]
    %v309 = vld [vmem:[#allocation8 + $0x1c] sm:$0xf]
    %v310 = vld [vmem:[#allocation8 + $0x20] sm:$0xf]
    %v311 = vld [vmem:[#allocation8 + $0x24] sm:$0xf]
    %v312 = vld [vmem:[#allocation8 + $0x28] sm:$0xf]
    %v313 = vld [vmem:[#allocation8 + $0x2c] sm:$0xf]
    %v314 = vld [vmem:[#allocation8 + $0x30] sm:$0xf]
    %v315 = vld [vmem:[#allocation8 + $0x34] sm:$0xf]
    %v316 = vld [vmem:[#allocation8 + $0x38] sm:$0xf]
    %v317 = vld [vmem:[#allocation8 + $0x3c] sm:$0xf]
    %v318 = vld [vmem:[%s5] sm:$0x1]
    %v320 = vlaneseq
    %v321 = vshrl.u32 %v320, 7
    %v322 = vsub.s32 0, %v321
    %v323 = vrot.slane %v318, %v322
    %v341 = vunpack.c.l.b16 %v302
    %v342 = vunpack.c.l.b16 %v303
    %v343 = vunpack.c.l.b16 %v304
    %v344 = vunpack.c.l.b16 %v305
    %v345 = vunpack.c.l.b16 %v306
    %v346 = vunpack.c.l.b16 %v307
    %v347 = vunpack.c.l.b16 %v308
    %v348 = vunpack.c.l.b16 %v309
    %v349 = vunpack.c.l.b16 %v310
    %v350 = vunpack.c.l.b16 %v311
    %v351 = vunpack.c.l.b16 %v312
    %v352 = vunpack.c.l.b16 %v313
    %v353 = vunpack.c.l.b16 %v314
    %v354 = vunpack.c.l.b16 %v315
    %v355 = vunpack.c.l.b16 %v316
    %v356 = vunpack.c.l.b16 %v317
    %v357 = vpack.c.b16 %v342, %v341
    %v358 = vpack.c.b16 %v344, %v343
    %v359 = vpack.c.b16 %v346, %v345
    %v360 = vpack.c.b16 %v348, %v347
    %v361 = vpack.c.b16 %v350, %v349
    %v362 = vpack.c.b16 %v352, %v351
    %v363 = vpack.c.b16 %v354, %v353
    %v364 = vpack.c.b16 %v356, %v355
    %373 = vmatprep.subr.bf16.mxu0 0
    %374 = vmatpush1.bf16.msra.mxu0 %v357
    %375 = vmatprep.subr.bf16.mxu0 0
    %376 = vmatpush1.bf16.msra.mxu0 %v358
    %377 = vmatprep.subr.bf16.mxu0 0
    %378 = vmatpush1.bf16.msra.mxu0 %v359
    %379 = vmatprep.subr.bf16.mxu0 0
    %380 = vmatpush1.bf16.msra.mxu0 %v360
    %381 = vmatprep.subr.bf16.mxu0 0
    %382 = vmatpush1.bf16.msra.mxu0 %v361
    %383 = vmatprep.subr.bf16.mxu0 0
    %384 = vmatpush1.bf16.msra.mxu0 %v362
    %385 = vmatprep.subr.bf16.mxu0 0
    %386 = vmatpush1.bf16.msra.mxu0 %v363
    %387 = vmatprep.subr.bf16.mxu0 0
    %388 = vmatpush1.bf16.msra.mxu0 %v364
    %389 = vmatprep.subr.bf16.mxu0 0
    %390 = vmatpush1.bf16.msra.mxu0 0
    %391 = vmatprep.subr.bf16.mxu0 0
    %392 = vmatpush1.bf16.msra.mxu0 0
    %393 = vmatprep.subr.bf16.mxu0 0
    %394 = vmatpush1.bf16.msra.mxu0 0
    %395 = vmatprep.subr.bf16.mxu0 0
    %396 = vmatpush1.bf16.msra.mxu0 0
    %397 = vmatprep.subr.bf16.mxu0 0
    %398 = vmatpush1.bf16.msra.mxu0 0
    %399 = vmatprep.subr.bf16.mxu0 0
    %400 = vmatpush1.bf16.msra.mxu0 0
    %401 = vmatprep.subr.bf16.mxu0 0
    %402 = vmatpush1.bf16.msra.mxu0 0
    %403 = vmatprep.subr.bf16.mxu0 0
    %404 = vmatpush1.bf16.msra.mxu0 0
    %405 = vmatprep.mubr.bf16.mxu0 0
    %406 = vmatmul.mubr.bf16.gmra.mrb[0].mxu0 %v301
    %v407 = vpop.f32.mrb[0].mxu0
    %v408 = vadd.f32 %v323, %v407
    %v409 = vpop.f32.mrb[0].mxu0
    %v410 = vpop.f32.mrb[0].mxu0
    %v411 = vadd.f32 %v323, %v410
    %v412 = vpop.f32.mrb[0].mxu0
    %413 = vdwg.mxu0
    %v414 = vmul.f32 %v408, 0.2
    %v415 = vmul.f32 %v411, 0.2
    %v416 = vmax.f32 %v408, %v414
    %v417 = vmax.f32 %v411, %v415
    %v418 = vld [vmem:[#allocation7 + $0x8] sm:$0xff]
    %v419 = vld [vmem:[#allocation7 + $0x18] sm:$0xff]
    %v420 = vld [vmem:[#allocation7 + $0x28] sm:$0xff]
    %v421 = vld [vmem:[#allocation7 + $0x38] sm:$0xff]
    %v422 = vld [vmem:[#allocation7 + $0x48] sm:$0xff]
    %v423 = vld [vmem:[#allocation7 + $0x58] sm:$0xff]
    %v424 = vld [vmem:[#allocation7 + $0x68] sm:$0xff]
    %v425 = vld [vmem:[#allocation7 + $0x78] sm:$0xff]
    %v426 = vld [vmem:[#allocation7 + $0x88] sm:$0xff]
    %v427 = vld [vmem:[#allocation7 + $0x98] sm:$0xff]
    %v428 = vld [vmem:[#allocation7 + $0xa8] sm:$0xff]
    %v429 = vld [vmem:[#allocation7 + $0xb8] sm:$0xff]
    %v430 = vld [vmem:[#allocation7 + $0xc8] sm:$0xff]
    %v431 = vld [vmem:[#allocation7 + $0xd8] sm:$0xff]
    %v432 = vld [vmem:[#allocation7 + $0xe8] sm:$0xff]
    %v433 = vld [vmem:[#allocation7 + $0xf8] sm:$0xff]
    %v434 = vld [vmem:[%s3 + $0x2] sm:$0x3]
    %v436 = vlaneseq
    %v437 = vshrl.u32 %v436, 7
    %v438 = vsub.s32 0, %v437
    %v439 = vrot.slane %v434, %v438
    %v440 = vlaneseq
    %v441 = vshrl.u32 %v440, 7
    %v442 = vsub.s32 1, %v441
    %v443 = vrot.slane %v434, %v442
    %v462 = vunpack.c.l.b16 %v418
    %v463 = vunpack.c.h.b16 %v418
    %v464 = vunpack.c.l.b16 %v419
    %v465 = vunpack.c.h.b16 %v419
    %v466 = vunpack.c.l.b16 %v420
    %v467 = vunpack.c.h.b16 %v420
    %v468 = vunpack.c.l.b16 %v421
    %v469 = vunpack.c.h.b16 %v421
    %v470 = vunpack.c.l.b16 %v422
    %v471 = vunpack.c.h.b16 %v422
    %v472 = vunpack.c.l.b16 %v423
    %v473 = vunpack.c.h.b16 %v423
    %v474 = vunpack.c.l.b16 %v424
    %v475 = vunpack.c.h.b16 %v424
    %v476 = vunpack.c.l.b16 %v425
    %v477 = vunpack.c.h.b16 %v425
    %v478 = vunpack.c.l.b16 %v426
    %v479 = vunpack.c.h.b16 %v426
    %v480 = vunpack.c.l.b16 %v427
    %v481 = vunpack.c.h.b16 %v427
    %v482 = vunpack.c.l.b16 %v428
    %v483 = vunpack.c.h.b16 %v428
    %v484 = vunpack.c.l.b16 %v429
    %v485 = vunpack.c.h.b16 %v429
    %v486 = vunpack.c.l.b16 %v430
    %v487 = vunpack.c.h.b16 %v430
    %v488 = vunpack.c.l.b16 %v431
    %v489 = vunpack.c.h.b16 %v431
    %v490 = vunpack.c.l.b16 %v432
    %v491 = vunpack.c.h.b16 %v432
    %v492 = vunpack.c.l.b16 %v433
    %v493 = vunpack.c.h.b16 %v433
    %v494 = vpack.c.b16 %v464, %v462
    %v495 = vpack.c.b16 %v465, %v463
    %v496 = vpack.c.b16 %v468, %v466
    %v497 = vpack.c.b16 %v469, %v467
    %v498 = vpack.c.b16 %v472, %v470
    %v499 = vpack.c.b16 %v473, %v471
    %v500 = vpack.c.b16 %v476, %v474
    %v501 = vpack.c.b16 %v477, %v475
    %v502 = vpack.c.b16 %v480, %v478
    %v503 = vpack.c.b16 %v481, %v479
    %v504 = vpack.c.b16 %v484, %v482
    %v505 = vpack.c.b16 %v485, %v483
    %v506 = vpack.c.b16 %v488, %v486
    %v507 = vpack.c.b16 %v489, %v487
    %v508 = vpack.c.b16 %v492, %v490
    %v509 = vpack.c.b16 %v493, %v491
    %526 = vmatprep.subr.bf16.mxu0 %v495
    %527 = vmatpush1.bf16.msra.mxu0 %v494
    %528 = vmatprep.subr.bf16.mxu0 %v497
    %529 = vmatpush1.bf16.msra.mxu0 %v496
    %530 = vmatprep.subr.bf16.mxu0 %v499
    %531 = vmatpush1.bf16.msra.mxu0 %v498
    %532 = vmatprep.subr.bf16.mxu0 %v501
    %533 = vmatpush1.bf16.msra.mxu0 %v500
    %534 = vmatprep.subr.bf16.mxu0 %v503
    %535 = vmatpush1.bf16.msra.mxu0 %v502
    %536 = vmatprep.subr.bf16.mxu0 %v505
    %537 = vmatpush1.bf16.msra.mxu0 %v504
    %538 = vmatprep.subr.bf16.mxu0 %v507
    %539 = vmatpush1.bf16.msra.mxu0 %v506
    %540 = vmatprep.subr.bf16.mxu0 %v509
    %541 = vmatpush1.bf16.msra.mxu0 %v508
    %542 = vmatprep.subr.bf16.mxu0 0
    %543 = vmatpush1.bf16.msra.mxu0 0
    %544 = vmatprep.subr.bf16.mxu0 0
    %545 = vmatpush1.bf16.msra.mxu0 0
    %546 = vmatprep.subr.bf16.mxu0 0
    %547 = vmatpush1.bf16.msra.mxu0 0
    %548 = vmatprep.subr.bf16.mxu0 0
    %549 = vmatpush1.bf16.msra.mxu0 0
    %550 = vmatprep.subr.bf16.mxu0 0
    %551 = vmatpush1.bf16.msra.mxu0 0
    %552 = vmatprep.subr.bf16.mxu0 0
    %553 = vmatpush1.bf16.msra.mxu0 0
    %554 = vmatprep.subr.bf16.mxu0 0
    %555 = vmatpush1.bf16.msra.mxu0 0
    %556 = vmatprep.subr.bf16.mxu0 0
    %557 = vmatpush1.bf16.msra.mxu0 0
    %558 = vmatprep.mubr.bf16.mxu0 0
    %559 = vmatmul.mubr.bf16.gmra.mrb[0].mxu0 %v140
    %v560 = vpop.f32.mrb[0].mxu0
    %v561 = vadd.f32 %v439, %v560
    %v562 = vpop.f32.mrb[0].mxu0
    %v563 = vadd.f32 %v443, %v562
    %v564 = vpop.f32.mrb[0].mxu0
    %v565 = vadd.f32 %v439, %v564
    %v566 = vpop.f32.mrb[0].mxu0
    %v567 = vadd.f32 %v443, %v566
    %568 = vdwg.mxu0
    %v569 = vadd.f32 %v561, 1.0
    %v570 = vadd.f32 %v565, 1.0
    %v571 = vmul.f32 %v416, %v107
    %v572 = vmul.f32 %v417, %v107
    %573 = vadd.xlane.f32.xlu0 %v571
    %v574 = vpop.xlane.xlu0 %573
    %575 = vadd.xlane.f32.xlu0 %v572
    %v576 = vpop.xlane.xlu0 %575
    %v577 = vmul.f32 %v574, 0.03125
    %v578 = vmul.f32 %v576, 0.03125
    %v579 = vsub.f32 %v416, %v577
    %v580 = vsub.f32 %v417, %v578
    %v581 = vmul.f32 %v579, %v107
    %v582 = vmul.f32 %v580, %v107
    %v583 = vmul.f32 %v581, %v581
    %v584 = vmul.f32 %v582, %v582
    %585 = vadd.xlane.f32.xlu0 %v583
    %v586 = vpop.xlane.xlu0 %585
    %587 = vadd.xlane.f32.xlu0 %v584
    %v588 = vpop.xlane.xlu0 %587
    %v589 = vmul.f32 %v586, 0.03125
    %v590 = vmul.f32 %v588, 0.03125
    %v591 = vadd.f32 %v589, 1e-05
    %v592 = vadd.f32 %v590, 1e-05
    %v593 = vrsqrt.pop %v591
    %v594 = vrsqrt.pop %v592
    %v595 = vmul.f32 %v581, %v593
    %v596 = vmul.f32 %v582, %v594
    %v597 = vmul.f32 %v569, %v595
    %v598 = vmul.f32 %v570, %v596
    %v599 = vadd.f32 %v597, %v563
    %v600 = vadd.f32 %v598, %v567
    %v601 = vmul.f32 %v599, 0.2
    %v602 = vmul.f32 %v600, 0.2
    %v603 = vmax.f32 %v599, %v601
    %v604 = vmax.f32 %v600, %v602
    %v605 = vpack.c.bf16 %v604, %v603
    %v606 = vld [vmem:[#allocation10] sm:$0xf]
    %v607 = vld [vmem:[#allocation10 + $0x4] sm:$0xf]
    %v608 = vld [vmem:[#allocation10 + $0x8] sm:$0xf]
    %v609 = vld [vmem:[#allocation10 + $0xc] sm:$0xf]
    %v610 = vld [vmem:[#allocation10 + $0x10] sm:$0xf]
    %v611 = vld [vmem:[#allocation10 + $0x14] sm:$0xf]
    %v612 = vld [vmem:[#allocation10 + $0x18] sm:$0xf]
    %v613 = vld [vmem:[#allocation10 + $0x1c] sm:$0xf]
    %v614 = vld [vmem:[#allocation10 + $0x20] sm:$0xf]
    %v615 = vld [vmem:[#allocation10 + $0x24] sm:$0xf]
    %v616 = vld [vmem:[#allocation10 + $0x28] sm:$0xf]
    %v617 = vld [vmem:[#allocation10 + $0x2c] sm:$0xf]
    %v618 = vld [vmem:[#allocation10 + $0x30] sm:$0xf]
    %v619 = vld [vmem:[#allocation10 + $0x34] sm:$0xf]
    %v620 = vld [vmem:[#allocation10 + $0x38] sm:$0xf]
    %v621 = vld [vmem:[#allocation10 + $0x3c] sm:$0xf]
    %v622 = vld [vmem:[%s7] sm:$0x1]
    %v624 = vlaneseq
    %v625 = vshrl.u32 %v624, 7
    %v626 = vsub.s32 0, %v625
    %v627 = vrot.slane %v622, %v626
    %v645 = vunpack.c.l.b16 %v606
    %v646 = vunpack.c.l.b16 %v607
    %v647 = vunpack.c.l.b16 %v608
    %v648 = vunpack.c.l.b16 %v609
    %v649 = vunpack.c.l.b16 %v610
    %v650 = vunpack.c.l.b16 %v611
    %v651 = vunpack.c.l.b16 %v612
    %v652 = vunpack.c.l.b16 %v613
    %v653 = vunpack.c.l.b16 %v614
    %v654 = vunpack.c.l.b16 %v615
    %v655 = vunpack.c.l.b16 %v616
    %v656 = vunpack.c.l.b16 %v617
    %v657 = vunpack.c.l.b16 %v618
    %v658 = vunpack.c.l.b16 %v619
    %v659 = vunpack.c.l.b16 %v620
    %v660 = vunpack.c.l.b16 %v621
    %v661 = vpack.c.b16 %v646, %v645
    %v662 = vpack.c.b16 %v648, %v647
    %v663 = vpack.c.b16 %v650, %v649
    %v664 = vpack.c.b16 %v652, %v651
    %v665 = vpack.c.b16 %v654, %v653
    %v666 = vpack.c.b16 %v656, %v655
    %v667 = vpack.c.b16 %v658, %v657
    %v668 = vpack.c.b16 %v660, %v659
    %677 = vmatprep.subr.bf16.mxu0 0
    %678 = vmatpush1.bf16.msra.mxu0 %v661
    %679 = vmatprep.subr.bf16.mxu0 0
    %680 = vmatpush1.bf16.msra.mxu0 %v662
    %681 = vmatprep.subr.bf16.mxu0 0
    %682 = vmatpush1.bf16.msra.mxu0 %v663
    %683 = vmatprep.subr.bf16.mxu0 0
    %684 = vmatpush1.bf16.msra.mxu0 %v664
    %685 = vmatprep.subr.bf16.mxu0 0
    %686 = vmatpush1.bf16.msra.mxu0 %v665
    %687 = vmatprep.subr.bf16.mxu0 0
    %688 = vmatpush1.bf16.msra.mxu0 %v666
    %689 = vmatprep.subr.bf16.mxu0 0
    %690 = vmatpush1.bf16.msra.mxu0 %v667
    %691 = vmatprep.subr.bf16.mxu0 0
    %692 = vmatpush1.bf16.msra.mxu0 %v668
    %693 = vmatprep.subr.bf16.mxu0 0
    %694 = vmatpush1.bf16.msra.mxu0 0
    %695 = vmatprep.subr.bf16.mxu0 0
    %696 = vmatpush1.bf16.msra.mxu0 0
    %697 = vmatprep.subr.bf16.mxu0 0
    %698 = vmatpush1.bf16.msra.mxu0 0
    %699 = vmatprep.subr.bf16.mxu0 0
    %700 = vmatpush1.bf16.msra.mxu0 0
    %701 = vmatprep.subr.bf16.mxu0 0
    %702 = vmatpush1.bf16.msra.mxu0 0
    %703 = vmatprep.subr.bf16.mxu0 0
    %704 = vmatpush1.bf16.msra.mxu0 0
    %705 = vmatprep.subr.bf16.mxu0 0
    %706 = vmatpush1.bf16.msra.mxu0 0
    %707 = vmatprep.subr.bf16.mxu0 0
    %708 = vmatpush1.bf16.msra.mxu0 0
    %709 = vmatprep.mubr.bf16.mxu0 0
    %710 = vmatmul.mubr.bf16.gmra.mrb[0].mxu0 %v605
    %v711 = vpop.f32.mrb[0].mxu0
    %v712 = vadd.f32 %v627, %v711
    %v713 = vpop.f32.mrb[0].mxu0
    %v714 = vpop.f32.mrb[0].mxu0
    %v715 = vadd.f32 %v627, %v714
    %v716 = vpop.f32.mrb[0].mxu0
    %717 = vdwg.mxu0
    %v718 = vmax.f32 %v712, 0.0
    %v719 = vmax.f32 %v715, 0.0
    %720 = vst [vmem:[#allocation11] sm:$0xff] %v718
    %721 = vst [vmem:[#allocation11 + $0x8] sm:$0xff] %v719
    // Predicated region
    $region54: #{tpu_custom_call.1} parent=1 // pred_check
      _
    $region55: #{tpu_custom_call.1} parent=1 // pred_check_branch
      %723 = sbr.rel (0) target = $region57
    $region56: #{tpu_custom_call.1} parent=1 // pred_region
      %s725 = ssub.s32 256, 256
      %726 = vsyncadd [#allocation4], %s725
      %s727 = sshll.u32 [#allocation11], 4
      %s728 = int_to_ptr.vmem [resolvable:$true] %s727
      %733 = dma.vmem_to_hbm [thread:$0]  %s728, 256, %s8, [#allocation4], 128, 128, 8
    $region57: #{tpu_custom_call.1} parent=1 // pred_fallthru
      _
    // Predicated region
    $region58: #{tpu_custom_call.1} parent=1 // pred_check
      _
    $region59: #{tpu_custom_call.1} parent=1 // pred_check_branch
      %735 = sbr.rel (0) target = $region61
    $region60: #{tpu_custom_call.1} parent=1 // pred_region
      %736 = dma.done [#allocation4], 256
    $region61: #{tpu_custom_call.1} parent=1 // pred_fallthru
      _
    %737 = vsyncpa [#allocation3], 1
    %738 = vsyncpa [#allocation6], 1
    %739 = vsyncpa [#allocation9], 1
    %740 = vsyncpa [#allocation4], 1

</llo_original>
